<compile_context>
chip_gen: v7x
topology: tpu7x:2x2x1
jax: 0.10.0
libtpu: 0.0.40
codegen_flags: <defaults>
</compile_context>

<pallas_src>
import functools

import jax
import jax.numpy as jnp
from jax.experimental import pallas as pl
from jax.experimental.pallas import tpu as pltpu


def _round_up(n: int, m: int) -> int:
    return ((n + m - 1) // m) * m


def _asr_chunk_kernel(x_ref, wih_ref, whh_ref, brnn_ref, wfc_ref, bfc_ref,
                      out_ref, h_ref, xp_ref, hs_ref, *, tc, bt):
    """One grid step == one (batch-tile, time-chunk) block.

    x_ref   : (TC*Bt, Dp)   input slab (time-major rows: row = t*Bt + b)
    wih_ref : (Dp, Hp)      W_ih^T  (bf16 or f32)
    whh_ref : (Hp, Hp)      W_hh^T  (f32, recurrence)
    brnn_ref: (1, Hp)       b_ih + b_hh (f32)
    wfc_ref : (Hp, Op)      W_fc^T  (bf16 or f32)
    bfc_ref : (1, Op)       b_fc (f32)
    out_ref : (TC*Bt, Op)   output slab (f32)
    h_ref   : (Bt, Hp)      VMEM scratch: hidden state carried across chunks
    xp_ref  : (TC*Bt, Hp)   VMEM scratch: per-chunk input projection
    hs_ref  : (TC*Bt, Hp)   VMEM scratch: per-chunk hidden states (deferred FC)
    """
    c = pl.program_id(1)  # time-chunk index (resets to 0 for each batch tile)

    @pl.when(c == 0)
    def _():
        h_ref[...] = jnp.zeros_like(h_ref)

    # --- hoisted, time-independent input projection (one big matmul) --------
    xp_ref[...] = (
        jnp.dot(x_ref[...], wih_ref[...], preferred_element_type=jnp.float32)
        + brnn_ref[...]).astype(xp_ref.dtype)

    # --- serial recurrence: only xp_t + h @ W_hh + tanh on the critical path
    def step(tt, h):
        row = pl.multiple_of(tt * bt, bt)
        pre = (xp_ref[pl.ds(row, bt), :].astype(jnp.float32)
               + jnp.dot(h, whh_ref[...], preferred_element_type=jnp.float32))
        h_new = jnp.tanh(pre)
        hs_ref[pl.ds(row, bt), :] = h_new.astype(hs_ref.dtype)
        return h_new

    h_ref[...] = jax.lax.fori_loop(0, tc, step, h_ref[...], unroll=8)

    # --- deferred FC: one big lane-dense matmul + unmasked store -------------
    out_ref[...] = (
        jnp.dot(hs_ref[...], wfc_ref[...], preferred_element_type=jnp.float32)
        + bfc_ref[...]).astype(out_ref.dtype)


@functools.partial(jax.jit,
                   static_argnames=("t_chunk", "batch_tile", "nonrec_bf16"))
def asr_forward(x, w_ih, w_hh, b_ih, b_hh, w_fc, b_fc, *,
                t_chunk=512, batch_tile=128, nonrec_bf16=True):
    """x: (B, T, D) float32. Returns (B, T, O) float32 == fc(rnn(x)[0])."""
    B, T, D = x.shape
    H = w_hh.shape[0]
    O = w_fc.shape[0]

    nonrec_dt = jnp.bfloat16 if nonrec_bf16 else jnp.float32
    nb = 2 if nonrec_bf16 else 4
    align = 16 if nonrec_bf16 else 8      # sublane packing for bf16 is 16

    Dp = _round_up(D, 128)                # lane-dense projection LHS
    Hp = _round_up(H, 128)                # lane-dense hidden
    Op = _round_up(O, 128)                # lane-dense output

    Bt = min(_round_up(B, align), _round_up(batch_tile, align))
    n_bt = -(-_round_up(B, align) // Bt)  # cdiv -> batch tiles ("parallel")
    Bp = n_bt * Bt

    TC = min(int(t_chunk), _round_up(T, 8))
    Tp = _round_up(T, TC)
    n_chunks = Tp // TC

    # ---- layout glue (cheap XLA ops outside the kernel) ---------------------
    # Rows of x_flat within a batch tile are ordered row = t*Bt + b_local, so a
    # (TC*Bt, Dp) block is exactly one time-chunk of one batch tile.
    x_tm = jnp.transpose(x, (1, 0, 2))                               # (T, B, D)
    x_tm = jnp.pad(x_tm, ((0, Tp - T), (0, Bp - B), (0, Dp - D)))    # (Tp,Bp,Dp)
    x_tm = x_tm.reshape(Tp, n_bt, Bt, Dp).transpose(1, 0, 2, 3)      # (nbt,Tp,Bt,Dp)
    x_flat = x_tm.reshape(n_bt, Tp * Bt, Dp).astype(nonrec_dt)

    wih_p = jnp.pad(w_ih.T, ((0, Dp - D), (0, Hp - H))).astype(nonrec_dt)
    whh_p = jnp.pad(w_hh.T, ((0, Hp - H), (0, Hp - H)))              # f32
    wfc_p = jnp.pad(w_fc.T, ((0, Hp - H), (0, Op - O))).astype(nonrec_dt)
    brnn_p = jnp.pad(b_ih + b_hh, (0, Hp - H)).reshape(1, Hp)
    bfc_p = jnp.pad(b_fc, (0, Op - O)).reshape(1, Op)

    # ---- VMEM budget: double-buffered x/out blocks + weights + scratch ------
    blk_bytes = 2 * (TC * Bt * Dp * nb + TC * Bt * Op * 4)
    w_bytes = 2 * (Dp * Hp * nb + Hp * Hp * 4 + Hp * Op * nb + (Hp + Op) * 4)
    scr_bytes = Bt * Hp * 4 + 2 * TC * Bt * Hp * nb
    vmem_limit = int(1.5 * (blk_bytes + w_bytes + scr_bytes)) + (4 << 20)
    vmem_limit = min(64 << 20, max(32 << 20, vmem_limit))

    kernel = functools.partial(_asr_chunk_kernel, tc=TC, bt=Bt)

    out_flat = pl.pallas_call(
        kernel,
        out_shape=jax.ShapeDtypeStruct((n_bt, Tp * Bt, Op), jnp.float32),
        grid_spec=pltpu.PrefetchScalarGridSpec(
            num_scalar_prefetch=0,
            grid=(n_bt, n_chunks),
            in_specs=[
                pl.BlockSpec((None, TC * Bt, Dp), lambda b, c: (b, c, 0)),  # x
                pl.BlockSpec((Dp, Hp), lambda b, c: (0, 0)),       # W_ih^T
                pl.BlockSpec((Hp, Hp), lambda b, c: (0, 0)),       # W_hh^T
                pl.BlockSpec((1, Hp), lambda b, c: (0, 0)),        # b_ih+b_hh
                pl.BlockSpec((Hp, Op), lambda b, c: (0, 0)),       # W_fc^T
                pl.BlockSpec((1, Op), lambda b, c: (0, 0)),        # b_fc
            ],
            out_specs=pl.BlockSpec((None, TC * Bt, Op), lambda b, c: (b, c, 0)),
            scratch_shapes=[
                pltpu.VMEM((Bt, Hp), jnp.float32),        # hidden-state carry
                pltpu.VMEM((TC * Bt, Hp), nonrec_dt),     # input projection
                pltpu.VMEM((TC * Bt, Hp), nonrec_dt),     # chunk hidden states
            ],
        ),
        compiler_params=pltpu.CompilerParams(
            # batch tiles are independent (megacore on v7x); chunk axis carries
            # the h_{t-1} -> h_t dependency, so it must stay sequential.
            dimension_semantics=("parallel", "arbitrary"),
            vmem_limit_bytes=vmem_limit,
        ),
    )(x_flat, wih_p, whh_p, brnn_p, wfc_p, bfc_p)

    out = out_flat.reshape(n_bt, Tp, Bt, Op).transpose(1, 0, 2, 3)
    out = out.reshape(Tp, Bp, Op)
    return jnp.transpose(out[:T, :B, :O], (1, 0, 2))                 # (B, T, O)


def _reference_forward(x, w_ih, w_hh, b_ih, b_hh, w_fc, b_fc):
    """Pure-JAX reference matching torch.nn.RNN(batch_first=True) + Linear."""
    B, _, _ = x.shape
    H = w_hh.shape[0]

    def step(h, x_t):
        h_new = jnp.tanh(x_t @ w_ih.T + b_ih + h @ w_hh.T + b_hh)
        return h_new, h_new

    h0 = jnp.zeros((B, H), jnp.float32)
    _, hs = jax.lax.scan(step, h0, jnp.transpose(x, (1, 0, 2)))
    out = jnp.transpose(hs, (1, 0, 2))          # (B, T, H)
    return out @ w_fc.T + b_fc


if __name__ == "__main__":
    # Small, TPU-friendly shapes consistent with the module's forward.
    B, T = 8, 20
    input_dim = 13        # MFCC features, as in the original module
    hidden_dim = 64       # scaled down from 256
    output_dim = 29       # num_characters (synthetic)

    key = jax.random.PRNGKey(0)
    kx, k1, k2, k3, k4, k5, k6 = jax.random.split(key, 7)

    # PyTorch-style uniform(-1/sqrt(H), 1/sqrt(H)) init, deterministic.
    bound = 1.0 / jnp.sqrt(jnp.float32(hidden_dim))
    w_ih = jax.random.uniform(k1, (hidden_dim, input_dim), jnp.float32, -bound, bound)
    w_hh = jax.random.uniform(k2, (hidden_dim, hidden_dim), jnp.float32, -bound, bound)
    b_ih = jax.random.uniform(k3, (hidden_dim,), jnp.float32, -bound, bound)
    b_hh = jax.random.uniform(k4, (hidden_dim,), jnp.float32, -bound, bound)
    w_fc = jax.random.uniform(k5, (output_dim, hidden_dim), jnp.float32, -bound, bound)
    b_fc = jax.random.uniform(k6, (output_dim,), jnp.float32, -bound, bound)

    x = jax.random.normal(kx, (B, T, input_dim), jnp.float32)
    ref = _reference_forward(x, w_ih, w_hh, b_ih, b_hh, w_fc, b_fc)

    # 1) Exact all-f32 path with a tiny chunk so the test exercises several
    #    grid steps (hidden state carried across chunks) + tail-of-time padding.
    out_f32 = asr_forward(x, w_ih, w_hh, b_ih, b_hh, w_fc, b_fc,
                          t_chunk=8, nonrec_bf16=False)
    out_f32 = jax.block_until_ready(out_f32)
    assert out_f32.shape == (B, T, output_dim), out_f32.shape
    err_f32 = float(jnp.max(jnp.abs(out_f32 - ref)))
    assert jnp.allclose(out_f32, ref, atol=2e-5, rtol=2e-5), err_f32

    # 2) Default perf path: bf16 operands for the non-recurrent matmuls
    #    (projection + FC), f32 recurrence.  bf16 error feeds the recurrence,
    #    so the tolerance here is bf16-scale; the f32 check above proves the
    #    algorithm is exact.
    out_bf16 = asr_forward(x, w_ih, w_hh, b_ih, b_hh, w_fc, b_fc)
    out_bf16 = jax.block_until_ready(out_bf16)
    assert out_bf16.shape == (B, T, output_dim), out_bf16.shape
    err_bf16 = float(jnp.max(jnp.abs(out_bf16 - ref)))
    assert jnp.allclose(out_bf16, ref, atol=1e-1, rtol=5e-2), err_bf16

    print("KERNEL_OK")
</pallas_src>

<mosaic_0001>
module attributes {stable_mosaic.version = 11 : i64} {
  func.func @_asr_chunk_kernel(%arg0: i32, %arg1: i32, %arg2: memref<1x64x128xf32, #tpu.memory_space<vmem>>, %arg3: memref<128x128xf32, #tpu.memory_space<vmem>>, %arg4: memref<128x128xf32, #tpu.memory_space<vmem>>, %arg5: memref<1x128xf32, #tpu.memory_space<vmem>>, %arg6: memref<128x128xf32, #tpu.memory_space<vmem>>, %arg7: memref<1x128xf32, #tpu.memory_space<vmem>>, %arg8: memref<1x64x128xf32, #tpu.memory_space<vmem>>, %arg9: memref<8x128xf32, #tpu.memory_space<vmem>>, %arg10: memref<64x128xf32, #tpu.memory_space<vmem>>, %arg11: memref<64x128xf32, #tpu.memory_space<vmem>>) attributes {dimension_semantics = [#tpu.dimension_semantics<parallel>, #tpu.dimension_semantics<arbitrary>], iteration_bounds = array<i64: 1, 3>, scalar_prefetch = 0 : i64, scratch_operands = 3 : i64, tpu.core_type = #tpu.core_type<tc>, window_params = [{transform_indices = @transform_0, window_bounds = array<i64: 1, 64, 128>}, {pipeline_mode = #tpu.pipeline_mode<synchronous>, transform_indices = @transform_1, window_bounds = array<i64: 128, 128>}, {pipeline_mode = #tpu.pipeline_mode<synchronous>, transform_indices = @transform_2, window_bounds = array<i64: 128, 128>}, {pipeline_mode = #tpu.pipeline_mode<synchronous>, transform_indices = @transform_3, window_bounds = array<i64: 1, 128>}, {pipeline_mode = #tpu.pipeline_mode<synchronous>, transform_indices = @transform_4, window_bounds = array<i64: 128, 128>}, {pipeline_mode = #tpu.pipeline_mode<synchronous>, transform_indices = @transform_5, window_bounds = array<i64: 1, 128>}, {transform_indices = @transform_6, window_bounds = array<i64: 1, 64, 128>}]} {
    %c0_i32 = arith.constant 0 : i32
    %0 = arith.cmpi eq, %arg1, %c0_i32 : i32
    %1 = arith.extui %0 : i1 to i32
    %c0_i32_0 = arith.constant 0 : i32
    %2 = arith.cmpi ne, %1, %c0_i32_0 : i32
    scf.if %2 {
      %cst_72 = arith.constant 0.000000e+00 : f32
      %102 = vector.broadcast %cst_72 : f32 to vector<8x128xf32>
      %c0_73 = arith.constant 0 : index
      %c0_74 = arith.constant 0 : index
      %103 = vector.load %arg9[%c0_73, %c0_74] : memref<8x128xf32, #tpu.memory_space<vmem>>, vector<8x128xf32>
      tpu.vector_store %arg9[%c0_73, %c0_74], %102 {strides = array<i32>} : memref<8x128xf32, #tpu.memory_space<vmem>>, vector<8x128xf32>,
    } else {
    }
    %c0 = arith.constant 0 : index
    %c0_1 = arith.constant 0 : index
    %c0_2 = arith.constant 0 : index
    %3 = vector.load %arg2[%c0, %c0_1, %c0_2] : memref<1x64x128xf32, #tpu.memory_space<vmem>>, vector<1x64x128xf32>
    %4 = vector.shape_cast %3 : vector<1x64x128xf32> to vector<64x128xf32>
    %c0_3 = arith.constant 0 : index
    %c0_4 = arith.constant 0 : index
    %5 = vector.load %arg3[%c0_3, %c0_4] : memref<128x128xf32, #tpu.memory_space<vmem>>, vector<128x128xf32>
    %cst = arith.constant dense<0.000000e+00> : vector<64x128xf32>
    %6 = tpu.matmul %4, %5, %cst {dimension_numbers = #tpu.dot_dimension_numbers<[1], [0], [0], [1], [0, 0, 1, 1], [], []>} : vector<64x128xf32>, vector<128x128xf32>, vector<64x128xf32> -> vector<64x128xf32>
    %c0_5 = arith.constant 0 : index
    %c0_6 = arith.constant 0 : index
    %7 = vector.load %arg5[%c0_5, %c0_6] : memref<1x128xf32, #tpu.memory_space<vmem>>, vector<1x128xf32>
    %8 = vector.broadcast %7 : vector<1x128xf32> to vector<64x128xf32>
    %9 = arith.addf %6, %8 : vector<64x128xf32>
    %c0_7 = arith.constant 0 : index
    %c0_8 = arith.constant 0 : index
    %10 = vector.load %arg10[%c0_7, %c0_8] : memref<64x128xf32, #tpu.memory_space<vmem>>, vector<64x128xf32>
    tpu.vector_store %arg10[%c0_7, %c0_8], %9 {strides = array<i32>} : memref<64x128xf32, #tpu.memory_space<vmem>>, vector<64x128xf32>,
    %c0_9 = arith.constant 0 : index
    %c0_10 = arith.constant 0 : index
    %11 = vector.load %arg9[%c0_9, %c0_10] : memref<8x128xf32, #tpu.memory_space<vmem>>, vector<8x128xf32>
    %c0_i32_11 = arith.constant 0 : i32
    %c8_i32 = arith.constant 8 : i32
    %12 = arith.muli %c0_i32_11, %c8_i32 : i32
    %13 = tpu.assume_multiple %12, 8 : i32
    %14 = arith.index_cast %13 : i32 to index
    %c0_12 = arith.constant 0 : index
    %15 = vector.load %arg10[%14, %c0_12] : memref<64x128xf32, #tpu.memory_space<vmem>>, vector<8x128xf32>
    %c0_13 = arith.constant 0 : index
    %c0_14 = arith.constant 0 : index
    %16 = vector.load %arg4[%c0_13, %c0_14] : memref<128x128xf32, #tpu.memory_space<vmem>>, vector<128x128xf32>
    %cst_15 = arith.constant dense<0.000000e+00> : vector<8x128xf32>
    %17 = tpu.matmul %11, %16, %cst_15 {dimension_numbers = #tpu.dot_dimension_numbers<[1], [0], [0], [1], [0, 0, 1, 1], [], []>} : vector<8x128xf32>, vector<128x128xf32>, vector<8x128xf32> -> vector<8x128xf32>
    %18 = arith.addf %15, %17 : vector<8x128xf32>
    %19 = math.tanh %18 : vector<8x128xf32>
    %20 = arith.index_cast %13 : i32 to index
    %c0_16 = arith.constant 0 : index
    %21 = vector.load %arg11[%20, %c0_16] : memref<64x128xf32, #tpu.memory_space<vmem>>, vector<8x128xf32>
    tpu.vector_store %arg11[%20, %c0_16], %19 {strides = array<i32>} : memref<64x128xf32, #tpu.memory_space<vmem>>, vector<8x128xf32>,
    %c1_i32 = arith.constant 1 : i32
    %c8_i32_17 = arith.constant 8 : i32
    %22 = arith.muli %c1_i32, %c8_i32_17 : i32
    %23 = tpu.assume_multiple %22, 8 : i32
    %24 = arith.index_cast %23 : i32 to index
    %c0_18 = arith.constant 0 : index
    %25 = vector.load %arg10[%24, %c0_18] : memref<64x128xf32, #tpu.memory_space<vmem>>, vector<8x128xf32>
    %c0_19 = arith.constant 0 : index
    %c0_20 = arith.constant 0 : index
    %26 = vector.load %arg4[%c0_19, %c0_20] : memref<128x128xf32, #tpu.memory_space<vmem>>, vector<128x128xf32>
    %cst_21 = arith.constant dense<0.000000e+00> : vector<8x128xf32>
    %27 = tpu.matmul %19, %26, %cst_21 {dimension_numbers = #tpu.dot_dimension_numbers<[1], [0], [0], [1], [0, 0, 1, 1], [], []>} : vector<8x128xf32>, vector<128x128xf32>, vector<8x128xf32> -> vector<8x128xf32>
    %28 = arith.addf %25, %27 : vector<8x128xf32>
    %29 = math.tanh %28 : vector<8x128xf32>
    %30 = arith.index_cast %23 : i32 to index
    %c0_22 = arith.constant 0 : index
    %31 = vector.load %arg11[%30, %c0_22] : memref<64x128xf32, #tpu.memory_space<vmem>>, vector<8x128xf32>
    tpu.vector_store %arg11[%30, %c0_22], %29 {strides = array<i32>} : memref<64x128xf32, #tpu.memory_space<vmem>>, vector<8x128xf32>,
    %c2_i32 = arith.constant 2 : i32
    %c8_i32_23 = arith.constant 8 : i32
    %32 = arith.muli %c2_i32, %c8_i32_23 : i32
    %33 = tpu.assume_multiple %32, 8 : i32
    %34 = arith.index_cast %33 : i32 to index
    %c0_24 = arith.constant 0 : index
    %35 = vector.load %arg10[%34, %c0_24] : memref<64x128xf32, #tpu.memory_space<vmem>>, vector<8x128xf32>
    %c0_25 = arith.constant 0 : index
    %c0_26 = arith.constant 0 : index
    %36 = vector.load %arg4[%c0_25, %c0_26] : memref<128x128xf32, #tpu.memory_space<vmem>>, vector<128x128xf32>
    %cst_27 = arith.constant dense<0.000000e+00> : vector<8x128xf32>
    %37 = tpu.matmul %29, %36, %cst_27 {dimension_numbers = #tpu.dot_dimension_numbers<[1], [0], [0], [1], [0, 0, 1, 1], [], []>} : vector<8x128xf32>, vector<128x128xf32>, vector<8x128xf32> -> vector<8x128xf32>
    %38 = arith.addf %35, %37 : vector<8x128xf32>
    %39 = math.tanh %38 : vector<8x128xf32>
    %40 = arith.index_cast %33 : i32 to index
    %c0_28 = arith.constant 0 : index
    %41 = vector.load %arg11[%40, %c0_28] : memref<64x128xf32, #tpu.memory_space<vmem>>, vector<8x128xf32>
    tpu.vector_store %arg11[%40, %c0_28], %39 {strides = array<i32>} : memref<64x128xf32, #tpu.memory_space<vmem>>, vector<8x128xf32>,
    %c3_i32 = arith.constant 3 : i32
    %c8_i32_29 = arith.constant 8 : i32
    %42 = arith.muli %c3_i32, %c8_i32_29 : i32
    %43 = tpu.assume_multiple %42, 8 : i32
    %44 = arith.index_cast %43 : i32 to index
    %c0_30 = arith.constant 0 : index
    %45 = vector.load %arg10[%44, %c0_30] : memref<64x128xf32, #tpu.memory_space<vmem>>, vector<8x128xf32>
    %c0_31 = arith.constant 0 : index
    %c0_32 = arith.constant 0 : index
    %46 = vector.load %arg4[%c0_31, %c0_32] : memref<128x128xf32, #tpu.memory_space<vmem>>, vector<128x128xf32>
    %cst_33 = arith.constant dense<0.000000e+00> : vector<8x128xf32>
    %47 = tpu.matmul %39, %46, %cst_33 {dimension_numbers = #tpu.dot_dimension_numbers<[1], [0], [0], [1], [0, 0, 1, 1], [], []>} : vector<8x128xf32>, vector<128x128xf32>, vector<8x128xf32> -> vector<8x128xf32>
    %48 = arith.addf %45, %47 : vector<8x128xf32>
    %49 = math.tanh %48 : vector<8x128xf32>
    %50 = arith.index_cast %43 : i32 to index
    %c0_34 = arith.constant 0 : index
    %51 = vector.load %arg11[%50, %c0_34] : memref<64x128xf32, #tpu.memory_space<vmem>>, vector<8x128xf32>
    tpu.vector_store %arg11[%50, %c0_34], %49 {strides = array<i32>} : memref<64x128xf32, #tpu.memory_space<vmem>>, vector<8x128xf32>,
    %c4_i32 = arith.constant 4 : i32
    %c8_i32_35 = arith.constant 8 : i32
    %52 = arith.muli %c4_i32, %c8_i32_35 : i32
    %53 = tpu.assume_multiple %52, 8 : i32
    %54 = arith.index_cast %53 : i32 to index
    %c0_36 = arith.constant 0 : index
    %55 = vector.load %arg10[%54, %c0_36] : memref<64x128xf32, #tpu.memory_space<vmem>>, vector<8x128xf32>
    %c0_37 = arith.constant 0 : index
    %c0_38 = arith.constant 0 : index
    %56 = vector.load %arg4[%c0_37, %c0_38] : memref<128x128xf32, #tpu.memory_space<vmem>>, vector<128x128xf32>
    %cst_39 = arith.constant dense<0.000000e+00> : vector<8x128xf32>
    %57 = tpu.matmul %49, %56, %cst_39 {dimension_numbers = #tpu.dot_dimension_numbers<[1], [0], [0], [1], [0, 0, 1, 1], [], []>} : vector<8x128xf32>, vector<128x128xf32>, vector<8x128xf32> -> vector<8x128xf32>
    %58 = arith.addf %55, %57 : vector<8x128xf32>
    %59 = math.tanh %58 : vector<8x128xf32>
    %60 = arith.index_cast %53 : i32 to index
    %c0_40 = arith.constant 0 : index
    %61 = vector.load %arg11[%60, %c0_40] : memref<64x128xf32, #tpu.memory_space<vmem>>, vector<8x128xf32>
    tpu.vector_store %arg11[%60, %c0_40], %59 {strides = array<i32>} : memref<64x128xf32, #tpu.memory_space<vmem>>, vector<8x128xf32>,
    %c5_i32 = arith.constant 5 : i32
    %c8_i32_41 = arith.constant 8 : i32
    %62 = arith.muli %c5_i32, %c8_i32_41 : i32
    %63 = tpu.assume_multiple %62, 8 : i32
    %64 = arith.index_cast %63 : i32 to index
    %c0_42 = arith.constant 0 : index
    %65 = vector.load %arg10[%64, %c0_42] : memref<64x128xf32, #tpu.memory_space<vmem>>, vector<8x128xf32>
    %c0_43 = arith.constant 0 : index
    %c0_44 = arith.constant 0 : index
    %66 = vector.load %arg4[%c0_43, %c0_44] : memref<128x128xf32, #tpu.memory_space<vmem>>, vector<128x128xf32>
    %cst_45 = arith.constant dense<0.000000e+00> : vector<8x128xf32>
    %67 = tpu.matmul %59, %66, %cst_45 {dimension_numbers = #tpu.dot_dimension_numbers<[1], [0], [0], [1], [0, 0, 1, 1], [], []>} : vector<8x128xf32>, vector<128x128xf32>, vector<8x128xf32> -> vector<8x128xf32>
    %68 = arith.addf %65, %67 : vector<8x128xf32>
    %69 = math.tanh %68 : vector<8x128xf32>
    %70 = arith.index_cast %63 : i32 to index
    %c0_46 = arith.constant 0 : index
    %71 = vector.load %arg11[%70, %c0_46] : memref<64x128xf32, #tpu.memory_space<vmem>>, vector<8x128xf32>
    tpu.vector_store %arg11[%70, %c0_46], %69 {strides = array<i32>} : memref<64x128xf32, #tpu.memory_space<vmem>>, vector<8x128xf32>,
    %c6_i32 = arith.constant 6 : i32
    %c8_i32_47 = arith.constant 8 : i32
    %72 = arith.muli %c6_i32, %c8_i32_47 : i32
    %73 = tpu.assume_multiple %72, 8 : i32
    %74 = arith.index_cast %73 : i32 to index
    %c0_48 = arith.constant 0 : index
    %75 = vector.load %arg10[%74, %c0_48] : memref<64x128xf32, #tpu.memory_space<vmem>>, vector<8x128xf32>
    %c0_49 = arith.constant 0 : index
    %c0_50 = arith.constant 0 : index
    %76 = vector.load %arg4[%c0_49, %c0_50] : memref<128x128xf32, #tpu.memory_space<vmem>>, vector<128x128xf32>
    %cst_51 = arith.constant dense<0.000000e+00> : vector<8x128xf32>
    %77 = tpu.matmul %69, %76, %cst_51 {dimension_numbers = #tpu.dot_dimension_numbers<[1], [0], [0], [1], [0, 0, 1, 1], [], []>} : vector<8x128xf32>, vector<128x128xf32>, vector<8x128xf32> -> vector<8x128xf32>
    %78 = arith.addf %75, %77 : vector<8x128xf32>
    %79 = math.tanh %78 : vector<8x128xf32>
    %80 = arith.index_cast %73 : i32 to index
    %c0_52 = arith.constant 0 : index
    %81 = vector.load %arg11[%80, %c0_52] : memref<64x128xf32, #tpu.memory_space<vmem>>, vector<8x128xf32>
    tpu.vector_store %arg11[%80, %c0_52], %79 {strides = array<i32>} : memref<64x128xf32, #tpu.memory_space<vmem>>, vector<8x128xf32>,
    %c7_i32 = arith.constant 7 : i32
    %c8_i32_53 = arith.constant 8 : i32
    %82 = arith.muli %c7_i32, %c8_i32_53 : i32
    %83 = tpu.assume_multiple %82, 8 : i32
    %84 = arith.index_cast %83 : i32 to index
    %c0_54 = arith.constant 0 : index
    %85 = vector.load %arg10[%84, %c0_54] : memref<64x128xf32, #tpu.memory_space<vmem>>, vector<8x128xf32>
    %c0_55 = arith.constant 0 : index
    %c0_56 = arith.constant 0 : index
    %86 = vector.load %arg4[%c0_55, %c0_56] : memref<128x128xf32, #tpu.memory_space<vmem>>, vector<128x128xf32>
    %cst_57 = arith.constant dense<0.000000e+00> : vector<8x128xf32>
    %87 = tpu.matmul %79, %86, %cst_57 {dimension_numbers = #tpu.dot_dimension_numbers<[1], [0], [0], [1], [0, 0, 1, 1], [], []>} : vector<8x128xf32>, vector<128x128xf32>, vector<8x128xf32> -> vector<8x128xf32>
    %88 = arith.addf %85, %87 : vector<8x128xf32>
    %89 = math.tanh %88 : vector<8x128xf32>
    %90 = arith.index_cast %83 : i32 to index
    %c0_58 = arith.constant 0 : index
    %91 = vector.load %arg11[%90, %c0_58] : memref<64x128xf32, #tpu.memory_space<vmem>>, vector<8x128xf32>
    tpu.vector_store %arg11[%90, %c0_58], %89 {strides = array<i32>} : memref<64x128xf32, #tpu.memory_space<vmem>>, vector<8x128xf32>,
    %c8_i32_59 = arith.constant 8 : i32
    %c0_60 = arith.constant 0 : index
    %c0_61 = arith.constant 0 : index
    %92 = vector.load %arg9[%c0_60, %c0_61] : memref<8x128xf32, #tpu.memory_space<vmem>>, vector<8x128xf32>
    tpu.vector_store %arg9[%c0_60, %c0_61], %89 {strides = array<i32>} : memref<8x128xf32, #tpu.memory_space<vmem>>, vector<8x128xf32>,
    %c0_62 = arith.constant 0 : index
    %c0_63 = arith.constant 0 : index
    %93 = vector.load %arg11[%c0_62, %c0_63] : memref<64x128xf32, #tpu.memory_space<vmem>>, vector<64x128xf32>
    %c0_64 = arith.constant 0 : index
    %c0_65 = arith.constant 0 : index
    %94 = vector.load %arg6[%c0_64, %c0_65] : memref<128x128xf32, #tpu.memory_space<vmem>>, vector<128x128xf32>
    %cst_66 = arith.constant dense<0.000000e+00> : vector<64x128xf32>
    %95 = tpu.matmul %93, %94, %cst_66 {dimension_numbers = #tpu.dot_dimension_numbers<[1], [0], [0], [1], [0, 0, 1, 1], [], []>} : vector<64x128xf32>, vector<128x128xf32>, vector<64x128xf32> -> vector<64x128xf32>
    %c0_67 = arith.constant 0 : index
    %c0_68 = arith.constant 0 : index
    %96 = vector.load %arg7[%c0_67, %c0_68] : memref<1x128xf32, #tpu.memory_space<vmem>>, vector<1x128xf32>
    %97 = vector.broadcast %96 : vector<1x128xf32> to vector<64x128xf32>
    %98 = arith.addf %95, %97 : vector<64x128xf32>
    %c0_69 = arith.constant 0 : index
    %c0_70 = arith.constant 0 : index
    %c0_71 = arith.constant 0 : index
    %99 = vector.load %arg8[%c0_69, %c0_70, %c0_71] : memref<1x64x128xf32, #tpu.memory_space<vmem>>, vector<1x64x128xf32>
    %100 = vector.shape_cast %99 : vector<1x64x128xf32> to vector<64x128xf32>
    %101 = vector.shape_cast %98 : vector<64x128xf32> to vector<1x64x128xf32>
    tpu.vector_store %arg8[%c0_69, %c0_70, %c0_71], %101 {strides = array<i32>} : memref<1x64x128xf32, #tpu.memory_space<vmem>>, vector<1x64x128xf32>,
    return
  }
  func.func @transform_0(%arg0: i32, %arg1: i32) -> (i32, i32, i32) {
    %c0_i32 = arith.constant 0 : i32
    %c0_i32_0 = arith.constant 0 : i32
    return %arg0, %arg1, %c0_i32 : i32, i32, i32
  }
  func.func @transform_1(%arg0: i32, %arg1: i32) -> (i32, i32) {
    %c0_i32 = arith.constant 0 : i32
    %c0_i32_0 = arith.constant 0 : i32
    %c0_i32_1 = arith.constant 0 : i32
    return %c0_i32, %c0_i32_0 : i32, i32
  }
  func.func @transform_2(%arg0: i32, %arg1: i32) -> (i32, i32) {
    %c0_i32 = arith.constant 0 : i32
    %c0_i32_0 = arith.constant 0 : i32
    %c0_i32_1 = arith.constant 0 : i32
    return %c0_i32, %c0_i32_0 : i32, i32
  }
  func.func @transform_3(%arg0: i32, %arg1: i32) -> (i32, i32) {
    %c0_i32 = arith.constant 0 : i32
    %c0_i32_0 = arith.constant 0 : i32
    %c0_i32_1 = arith.constant 0 : i32
    return %c0_i32, %c0_i32_0 : i32, i32
  }
  func.func @transform_4(%arg0: i32, %arg1: i32) -> (i32, i32) {
    %c0_i32 = arith.constant 0 : i32
    %c0_i32_0 = arith.constant 0 : i32
    %c0_i32_1 = arith.constant 0 : i32
    return %c0_i32, %c0_i32_0 : i32, i32
  }
  func.func @transform_5(%arg0: i32, %arg1: i32) -> (i32, i32) {
    %c0_i32 = arith.constant 0 : i32
    %c0_i32_0 = arith.constant 0 : i32
    %c0_i32_1 = arith.constant 0 : i32
    return %c0_i32, %c0_i32_0 : i32, i32
  }
  func.func @transform_6(%arg0: i32, %arg1: i32) -> (i32, i32, i32) {
    %c0_i32 = arith.constant 0 : i32
    %c0_i32_0 = arith.constant 0 : i32
    return %arg0, %arg1, %c0_i32 : i32, i32, i32
  }
}

</mosaic_0001>

<llo_original>
// kernel: asr_forward.1
$region0: #{asr_forward.1}
  #allocation0 [shape = 'u32[]', space=smem, size = 0x4, offset = 0x4, fixed_abs, tag = 'smem constant byte address 0x4 - core index']
  #allocation1 [shape = 'u32[144,128]{1,0:T(1,128)}', space=vmem, size = 0x12000, scoped, tag = 'internal scratch']
  #allocation2 [shape = 'f32[8,128]{1,0:T(8,128)}', space=vmem, size = 0x1000, scoped, tag = 'scratch operand']
  #allocation3 [shape = 'f32[64,128]{1,0:T(8,128)}', space=vmem, size = 0x8000, scoped, tag = 'scratch operand']
  #allocation4 [shape = 'f32[64,128]{1,0:T(8,128)}', space=vmem, size = 0x8000, scoped, tag = 'scratch operand']
  %s0 = inlined_call_operand.vmem [shape: f32[1,192,128], index: 0, kind: input, shape index: {}]
  %s1 = inlined_call_operand.vmem [shape: f32[128,128], index: 1, kind: input, shape index: {}]
  %s2 = inlined_call_operand.vmem [shape: f32[128,128], index: 2, kind: input, shape index: {}]
  %s3 = inlined_call_operand.vmem [shape: f32[1,128], index: 3, kind: input, shape index: {}]
  %s4 = inlined_call_operand.vmem [shape: f32[128,128], index: 4, kind: input, shape index: {}]
  %s5 = inlined_call_operand.vmem [shape: f32[1,128], index: 5, kind: input, shape index: {}]
  %s6 = inlined_call_operand.vmem [shape: f32[1,192,128], index: 6, kind: output, shape index: {}]
  %s7 = sld [smem:[#allocation0]]
  $region61: #{asr_forward.1} parent=0
    _
  %s9 = ssub.s32 1, %s7
  %s10 = scalar_select 0, %s9, %s7
  loop: start=0, step=1, limit=5
  $region2: #{asr_forward.1} parent=0 // loop_pre_header
    _
  $region3: #{asr_forward.1} parent=0 // loop_header
    %s12 = sphi 0, %s16
    %p13 = scmp.ge.s32.totalorder %s12, 5
    %s19 = sphi 0, %s31
    %s20 = sphi 0, %s27
    %s21 = sphi 0, %s19
    %s22 = sphi 0, %s20
    %s23 = sphi 0, %s21
    %s24 = sphi 0, %s22
    %s36 = sphi 0, %s38
    %s39 = sphi 0, %s36
    %s40 = sphi 0, %s39
    %s56 = sphi 0, %s40
    %s60 = sphi 0, %s60
    %s62 = sphi 0, %s60
    %s63 = sphi 0, %s62
    %s77 = sphi 0, %s63
    %s81 = sphi 0, %s81
    %s83 = sphi 0, %s81
    %s84 = sphi 0, %s83
    %s98 = sphi 0, %s84
    %s102 = sphi 0, %s102
    %s104 = sphi 0, %s102
    %s105 = sphi 0, %s104
    %s119 = sphi 0, %s105
    %s123 = sphi 0, %s123
    %s125 = sphi 0, %s123
    %s126 = sphi 0, %s125
    %s140 = sphi 0, %s126
    %s144 = sphi 0, %s144
    %s146 = sphi 0, %s144
    %s147 = sphi 0, %s146
    %s161 = sphi 0, %s147
    %s169 = sphi 0, %s171
    %s172 = sphi 0, %s169
    %s173 = sphi 0, %s172
    %s189 = sphi 0, %s173
  $region4: #{asr_forward.1} parent=0 // loop_header_branch
    %15 = sbr.rel (%p13) target = $region8
  $region5: #{asr_forward.1} parent=0 // loop_body
    %s17 = ssub.s32 %s12, 1
    %s18 = ssub.s32 %s12, 2
    %s25 = sadd.s32 1, %s20
    %p26 = scmp.ge.s32.totalorder %s25, 3
    %s27 = scalar_select %p26, 0, %s25
    %s28 = sadd.s32 1, %s19
    %s29 = scalar_select %p26, %s28, %s19
    %p30 = scmp.ge.s32.totalorder %s29, 1
    %s31 = scalar_select %p30, 0, %s29
    %s32 = ssub.s32 %s19, %s31
    %s33 = ssub.s32 %s20, %s27
    %s34 = sor.u32 %s32, %s33
    %p35 = scmp.eq.s32.totalorder %s34, 0
    %s37 = sadd.s32 %s36, 1
    %s38 = scalar_select %p35, %s36, %s37
    %p41 = pneg %p35
    %p42 = scmp.eq.s32.totalorder %s12, 2
    %p43 = por %p41, %p42
    %p44 = scmp.ne.s32.totalorder %s36, %s39
    %p45 = scmp.eq.s32.totalorder %s12, 0
    %p46 = por %p44, %p45
    %p47 = scmp.ne.s32.totalorder %s36, %s39
    %p48 = scmp.eq.s32.totalorder %s17, 2
    %p49 = por %p47, %p48
    %p50 = scmp.ne.s32.totalorder %s39, %s40
    %p51 = scmp.eq.s32.totalorder %s17, 0
    %p52 = por %p50, %p51
    %p53 = scmp.ne.s32.totalorder %s39, %s40
    %p54 = scmp.eq.s32.totalorder %s18, 2
    %p55 = por %p53, %p54
    %p57 = scmp.ne.s32.totalorder %s40, %s56
    %p58 = scmp.eq.s32.totalorder %s18, 0
    %p59 = por %p57, %p58
    %s61 = sadd.s32 %s60, 1
    %p64 = scmp.eq.s32.totalorder %s12, 2
    %p65 = scmp.ne.s32.totalorder %s60, %s62
    %p66 = scmp.eq.s32.totalorder %s12, 0
    %p67 = por %p65, %p66
    %p68 = scmp.ne.s32.totalorder %s60, %s62
    %p69 = scmp.eq.s32.totalorder %s17, 2
    %p70 = por %p68, %p69
    %p71 = scmp.ne.s32.totalorder %s62, %s63
    %p72 = scmp.eq.s32.totalorder %s17, 0
    %p73 = por %p71, %p72
    %p74 = scmp.ne.s32.totalorder %s62, %s63
    %p75 = scmp.eq.s32.totalorder %s18, 2
    %p76 = por %p74, %p75
    %p78 = scmp.ne.s32.totalorder %s63, %s77
    %p79 = scmp.eq.s32.totalorder %s18, 0
    %p80 = por %p78, %p79
    %s82 = sadd.s32 %s81, 1
    %p85 = scmp.eq.s32.totalorder %s12, 2
    %p86 = scmp.ne.s32.totalorder %s81, %s83
    %p87 = scmp.eq.s32.totalorder %s12, 0
    %p88 = por %p86, %p87
    %p89 = scmp.ne.s32.totalorder %s81, %s83
    %p90 = scmp.eq.s32.totalorder %s17, 2
    %p91 = por %p89, %p90
    %p92 = scmp.ne.s32.totalorder %s83, %s84
    %p93 = scmp.eq.s32.totalorder %s17, 0
    %p94 = por %p92, %p93
    %p95 = scmp.ne.s32.totalorder %s83, %s84
    %p96 = scmp.eq.s32.totalorder %s18, 2
    %p97 = por %p95, %p96
    %p99 = scmp.ne.s32.totalorder %s84, %s98
    %p100 = scmp.eq.s32.totalorder %s18, 0
    %p101 = por %p99, %p100
    %s103 = sadd.s32 %s102, 1
    %p106 = scmp.eq.s32.totalorder %s12, 2
    %p107 = scmp.ne.s32.totalorder %s102, %s104
    %p108 = scmp.eq.s32.totalorder %s12, 0
    %p109 = por %p107, %p108
    %p110 = scmp.ne.s32.totalorder %s102, %s104
    %p111 = scmp.eq.s32.totalorder %s17, 2
    %p112 = por %p110, %p111
    %p113 = scmp.ne.s32.totalorder %s104, %s105
    %p114 = scmp.eq.s32.totalorder %s17, 0
    %p115 = por %p113, %p114
    %p116 = scmp.ne.s32.totalorder %s104, %s105
    %p117 = scmp.eq.s32.totalorder %s18, 2
    %p118 = por %p116, %p117
    %p120 = scmp.ne.s32.totalorder %s105, %s119
    %p121 = scmp.eq.s32.totalorder %s18, 0
    %p122 = por %p120, %p121
    %s124 = sadd.s32 %s123, 1
    %p127 = scmp.eq.s32.totalorder %s12, 2
    %p128 = scmp.ne.s32.totalorder %s123, %s125
    %p129 = scmp.eq.s32.totalorder %s12, 0
    %p130 = por %p128, %p129
    %p131 = scmp.ne.s32.totalorder %s123, %s125
    %p132 = scmp.eq.s32.totalorder %s17, 2
    %p133 = por %p131, %p132
    %p134 = scmp.ne.s32.totalorder %s125, %s126
    %p135 = scmp.eq.s32.totalorder %s17, 0
    %p136 = por %p134, %p135
    %p137 = scmp.ne.s32.totalorder %s125, %s126
    %p138 = scmp.eq.s32.totalorder %s18, 2
    %p139 = por %p137, %p138
    %p141 = scmp.ne.s32.totalorder %s126, %s140
    %p142 = scmp.eq.s32.totalorder %s18, 0
    %p143 = por %p141, %p142
    %s145 = sadd.s32 %s144, 1
    %p148 = scmp.eq.s32.totalorder %s12, 2
    %p149 = scmp.ne.s32.totalorder %s144, %s146
    %p150 = scmp.eq.s32.totalorder %s12, 0
    %p151 = por %p149, %p150
    %p152 = scmp.ne.s32.totalorder %s144, %s146
    %p153 = scmp.eq.s32.totalorder %s17, 2
    %p154 = por %p152, %p153
    %p155 = scmp.ne.s32.totalorder %s146, %s147
    %p156 = scmp.eq.s32.totalorder %s17, 0
    %p157 = por %p155, %p156
    %p158 = scmp.ne.s32.totalorder %s146, %s147
    %p159 = scmp.eq.s32.totalorder %s18, 2
    %p160 = por %p158, %p159
    %p162 = scmp.ne.s32.totalorder %s147, %s161
    %p163 = scmp.eq.s32.totalorder %s18, 0
    %p164 = por %p162, %p163
    %s165 = ssub.s32 %s19, %s31
    %s166 = ssub.s32 %s20, %s27
    %s167 = sor.u32 %s165, %s166
    %p168 = scmp.eq.s32.totalorder %s167, 0
    %s170 = sadd.s32 %s169, 1
    %s171 = scalar_select %p168, %s169, %s170
    %p174 = pneg %p168
    %p175 = scmp.eq.s32.totalorder %s12, 2
    %p176 = por %p174, %p175
    %p177 = scmp.ne.s32.totalorder %s169, %s172
    %p178 = scmp.eq.s32.totalorder %s12, 0
    %p179 = por %p177, %p178
    %p180 = scmp.ne.s32.totalorder %s169, %s172
    %p181 = scmp.eq.s32.totalorder %s17, 2
    %p182 = por %p180, %p181
    %p183 = scmp.ne.s32.totalorder %s172, %s173
    %p184 = scmp.eq.s32.totalorder %s17, 0
    %p185 = por %p183, %p184
    %p186 = scmp.ne.s32.totalorder %s172, %s173
    %p187 = scmp.eq.s32.totalorder %s18, 2
    %p188 = por %p186, %p187
    %p190 = scmp.ne.s32.totalorder %s173, %s189
    %p191 = scmp.eq.s32.totalorder %s18, 0
    %p192 = por %p190, %p191
    %p193 = scmp.le.s32.totalorder 1, %s12
    %p194 = scmp.lt.s32.totalorder %s12, 4
    %p195 = pnand %p193, %p194
    %p196 = pneg %p195
    // Predicated region
    $region9: #{asr_forward.1} parent=5 // pred_check
      _
    $region10: #{asr_forward.1} parent=5 // pred_check_branch
      %198 = sbr.rel (%p195) target = $region12
    $region11: #{asr_forward.1} parent=5 // pred_region
      %s199 = ssub.s32 %s12, 1
      // Predicated region
      $region13: #{asr_forward.1} parent=11 // pred_check
        %p200 = pneg %p73
      $region14: #{asr_forward.1} parent=11 // pred_check_branch
        %202 = sbr.rel (%p200) target = $region16
      $region15: #{asr_forward.1} parent=11 // pred_region
        _
      $region16: #{asr_forward.1} parent=11 // pred_fallthru
        _
      // Predicated region
      $region17: #{asr_forward.1} parent=11 // pred_check
        %p203 = pneg %p94
      $region18: #{asr_forward.1} parent=11 // pred_check_branch
        %205 = sbr.rel (%p203) target = $region20
      $region19: #{asr_forward.1} parent=11 // pred_region
        _
      $region20: #{asr_forward.1} parent=11 // pred_fallthru
        _
      // Predicated region
      $region21: #{asr_forward.1} parent=11 // pred_check
        %p206 = pneg %p115
      $region22: #{asr_forward.1} parent=11 // pred_check_branch
        %208 = sbr.rel (%p206) target = $region24
      $region23: #{asr_forward.1} parent=11 // pred_region
        _
      $region24: #{asr_forward.1} parent=11 // pred_fallthru
        _
      // Predicated region
      $region25: #{asr_forward.1} parent=11 // pred_check
        %p209 = pneg %p136
      $region26: #{asr_forward.1} parent=11 // pred_check_branch
        %211 = sbr.rel (%p209) target = $region28
      $region27: #{asr_forward.1} parent=11 // pred_region
        _
      $region28: #{asr_forward.1} parent=11 // pred_fallthru
        _
      // Predicated region
      $region29: #{asr_forward.1} parent=11 // pred_check
        %p212 = pneg %p157
      $region30: #{asr_forward.1} parent=11 // pred_check_branch
        %214 = sbr.rel (%p212) target = $region32
      $region31: #{asr_forward.1} parent=11 // pred_region
        _
      $region32: #{asr_forward.1} parent=11 // pred_fallthru
        _
    $region12: #{asr_forward.1} parent=5 // pred_fallthru
      _
    %p215 = scmp.lt.s32.totalorder %s12, 3
    // Predicated region
    $region33: #{asr_forward.1} parent=5 // pred_check
      %p216 = pneg %p215
    $region34: #{asr_forward.1} parent=5 // pred_check_branch
      %218 = sbr.rel (%p216) target = $region36
    $region35: #{asr_forward.1} parent=5 // pred_region
      // Predicated region
      $region37: #{asr_forward.1} parent=35 // pred_check
        %p219 = pneg %p46
      $region38: #{asr_forward.1} parent=35 // pred_check_branch
        %221 = sbr.rel (%p219) target = $region40
      $region39: #{asr_forward.1} parent=35 // pred_region
        %s222 = smul.u32 8, %s20
        %p223 = scmp.lt.s32.totalorder %s19, 0
        %s224 = scalar_select %p223, %s19, 0
        %p225 = scmp.lt.s32.totalorder %s222, 23
        %s226 = scalar_select %p225, %s222, 23
        %s227 = smul.addr %s224, 24
        %s228 = sadd.s32 %s226, %s227
        %s229 = smul.addr %s228, 8
        %s230 = scalar_lea.vmem %s0, %s229
        %s231 = smul.u32 8, %s20
      $region40: #{asr_forward.1} parent=35 // pred_fallthru
        _
    $region36: #{asr_forward.1} parent=5 // pred_fallthru
      _
    %p232 = scmp.le.s32.totalorder 1, %s12
    %p233 = scmp.lt.s32.totalorder %s12, 4
    %p234 = pnand %p232, %p233
    %p235 = pneg %p234
    // Predicated region
    $region41: #{asr_forward.1} parent=5 // pred_check
      _
    $region42: #{asr_forward.1} parent=5 // pred_check_branch
      %237 = sbr.rel (%p234) target = $region44
    $region43: #{asr_forward.1} parent=5 // pred_region
      %s238 = ssub.s32 %s12, 1
      %s239 = smul.u32 8, %s22
      %p240 = scmp.lt.s32.totalorder %s21, 0
      %s241 = scalar_select %p240, %s21, 0
      %p242 = scmp.lt.s32.totalorder %s239, 23
      %s243 = scalar_select %p242, %s239, 23
      %s244 = smul.addr %s241, 24
      %s245 = sadd.s32 %s243, %s244
      %s246 = smul.addr %s245, 8
      %s247 = scalar_lea.vmem %s0, %s246
      %p248 = pneg %p52
      %p249 = pneg %p49
      %p250 = pneg %p73
      %p251 = pneg %p70
      %p252 = pneg %p94
      %p253 = pneg %p91
      %p254 = pneg %p115
      %p255 = pneg %p112
      %p256 = pneg %p136
      %p257 = pneg %p133
      %p258 = pneg %p157
      %p259 = pneg %p154
      %p260 = pneg %p185
      %p261 = pneg %p182
      %s262 = smul.u32 8, %s22
      %p263 = scmp.lt.s32.totalorder %s21, 0
      %s264 = scalar_select %p263, %s21, 0
      %p265 = scmp.lt.s32.totalorder %s262, 23
      %s266 = scalar_select %p265, %s262, 23
      %s267 = smul.addr %s264, 24
      %s268 = sadd.s32 %s266, %s267
      %s269 = smul.addr %s268, 8
      %s270 = scalar_lea.vmem %s6, %s269
      %s271 = smul.u32 8, %s22
      %p272 = scmp.lt.s32.totalorder %s21, 0
      %s273 = scalar_select %p272, %s21, 0
      %p274 = scmp.lt.s32.totalorder %s271, 23
      %s275 = scalar_select %p274, %s271, 23
      %s276 = smul.addr %s273, 24
      %s277 = sadd.s32 %s275, %s276
      %s278 = smul.addr %s277, 8
      %s279 = scalar_lea.vmem %s0, %s278
      %s280 = smul.u32 8, %s22
      %s281 = smul.u32 8, %s22
      %p282 = scmp.lt.s32.totalorder %s21, 0
      %s283 = scalar_select %p282, %s21, 0
      %p284 = scmp.lt.s32.totalorder %s281, 23
      %s285 = scalar_select %p284, %s281, 23
      %s286 = smul.addr %s283, 24
      %s287 = sadd.s32 %s285, %s286
      %s288 = smul.addr %s287, 8
      %s289 = scalar_lea.vmem %s6, %s288
      %s290 = smul.u32 8, %s22
      %p291 = scmp.eq.s32.totalorder %s22, 0
      // Predicated region
      $region45: #{asr_forward.1} parent=43 // pred_check
        %p292 = pneg %p291
      $region46: #{asr_forward.1} parent=43 // pred_check_branch
        %294 = sbr.rel (%p292) target = $region48
      $region47: #{asr_forward.1} parent=43 // pred_region
        %295 = vst [vmem:[#allocation2] sm:$0xff] 0.0
      $region48: #{asr_forward.1} parent=43 // pred_fallthru
        _
      %v296 = vld [vmem:[%s279] sm:$0xff]
      %v297 = vld [vmem:[%s279 + $0x8] sm:$0xff]
      %v298 = vld [vmem:[%s279 + $0x10] sm:$0xff]
      %v299 = vld [vmem:[%s279 + $0x18] sm:$0xff]
      %v300 = vld [vmem:[%s279 + $0x20] sm:$0xff]
      %v301 = vld [vmem:[%s279 + $0x28] sm:$0xff]
      %v302 = vld [vmem:[%s279 + $0x30] sm:$0xff]
      %v303 = vld [vmem:[%s279 + $0x38] sm:$0xff]
      %v304 = vld [vmem:[%s1] sm:$0xff]
      %v305 = vld [vmem:[%s1 + $0x8] sm:$0xff]
      %v306 = vld [vmem:[%s1 + $0x10] sm:$0xff]
      %v307 = vld [vmem:[%s1 + $0x18] sm:$0xff]
      %v308 = vld [vmem:[%s1 + $0x20] sm:$0xff]
      %v309 = vld [vmem:[%s1 + $0x28] sm:$0xff]
      %v310 = vld [vmem:[%s1 + $0x30] sm:$0xff]
      %v311 = vld [vmem:[%s1 + $0x38] sm:$0xff]
      %v312 = vld [vmem:[%s1 + $0x40] sm:$0xff]
      %v313 = vld [vmem:[%s1 + $0x48] sm:$0xff]
      %v314 = vld [vmem:[%s1 + $0x50] sm:$0xff]
      %v315 = vld [vmem:[%s1 + $0x58] sm:$0xff]
      %v316 = vld [vmem:[%s1 + $0x60] sm:$0xff]
      %v317 = vld [vmem:[%s1 + $0x68] sm:$0xff]
      %v318 = vld [vmem:[%s1 + $0x70] sm:$0xff]
      %v319 = vld [vmem:[%s1 + $0x78] sm:$0xff]
      %v320 = vld [vmem:[%s3] sm:$0x1]
      %v322 = vlaneseq
      %v323 = vshrl.u32 %v322, 7
      %v324 = vsub.s32 0, %v323
      %v325 = vrot.slane %v320, %v324
      %327 = vmatprep.subr.mxu0 0.0
      %328 = vmatpush1.msra.mxu0 %v304
      %329 = vmatprep.subr.mxu0 0.0
      %330 = vmatpush1.msra.mxu0 %v305
      %331 = vmatprep.subr.mxu0 0.0
      %332 = vmatpush1.msra.mxu0 %v306
      %333 = vmatprep.subr.mxu0 0.0
      %334 = vmatpush1.msra.mxu0 %v307
      %335 = vmatprep.subr.mxu0 0.0
      %336 = vmatpush1.msra.mxu0 %v308
      %337 = vmatprep.subr.mxu0 0.0
      %338 = vmatpush1.msra.mxu0 %v309
      %339 = vmatprep.subr.mxu0 0.0
      %340 = vmatpush1.msra.mxu0 %v310
      %341 = vmatprep.subr.mxu0 0.0
      %342 = vmatpush1.msra.mxu0 %v311
      %343 = vmatprep.subr.mxu0 0.0
      %344 = vmatpush1.msra.mxu0 %v312
      %345 = vmatprep.subr.mxu0 0.0
      %346 = vmatpush1.msra.mxu0 %v313
      %347 = vmatprep.subr.mxu0 0.0
      %348 = vmatpush1.msra.mxu0 %v314
      %349 = vmatprep.subr.mxu0 0.0
      %350 = vmatpush1.msra.mxu0 %v315
      %351 = vmatprep.subr.mxu0 0.0
      %352 = vmatpush1.msra.mxu0 %v316
      %353 = vmatprep.subr.mxu0 0.0
      %354 = vmatpush1.msra.mxu0 %v317
      %355 = vmatprep.subr.mxu0 0.0
      %356 = vmatpush1.msra.mxu0 %v318
      %357 = vmatprep.subr.mxu0 0.0
      %358 = vmatpush1.msra.mxu0 %v319
      %359 = vmatprep.subr.mxu0 0.0
      %360 = vmatpush1.msra.mxu0 0.0
      %361 = vmatprep.subr.mxu0 0.0
      %362 = vmatpush1.msra.mxu0 0.0
      %363 = vmatprep.subr.mxu0 0.0
      %364 = vmatpush1.msra.mxu0 0.0
      %365 = vmatprep.subr.mxu0 0.0
      %366 = vmatpush1.msra.mxu0 0.0
      %367 = vmatprep.subr.mxu0 0.0
      %368 = vmatpush1.msra.mxu0 0.0
      %369 = vmatprep.subr.mxu0 0.0
      %370 = vmatpush1.msra.mxu0 0.0
      %371 = vmatprep.subr.mxu0 0.0
      %372 = vmatpush1.msra.mxu0 0.0
      %373 = vmatprep.subr.mxu0 0.0
      %374 = vmatpush1.msra.mxu0 0.0
      %375 = vmatprep.subr.mxu0 0.0
      %376 = vmatpush1.msra.mxu0 0.0
      %377 = vmatprep.subr.mxu0 0.0
      %378 = vmatpush1.msra.mxu0 0.0
      %379 = vmatprep.subr.mxu0 0.0
      %380 = vmatpush1.msra.mxu0 0.0
      %381 = vmatprep.subr.mxu0 0.0
      %382 = vmatpush1.msra.mxu0 0.0
      %383 = vmatprep.subr.mxu0 0.0
      %384 = vmatpush1.msra.mxu0 0.0
      %385 = vmatprep.subr.mxu0 0.0
      %386 = vmatpush1.msra.mxu0 0.0
      %387 = vmatprep.subr.mxu0 0.0
      %388 = vmatpush1.msra.mxu0 0.0
      %389 = vmatprep.subr.mxu0 0.0
      %390 = vmatpush1.msra.mxu0 0.0
      %391 = vmatprep.mubr.f32.mxu0 0.0
      %392 = vmatmul.mubr.f32.gmra.mrb[0].mxu0 %v296
      %v393 = vpop.f32.mrb[0].mxu0
      %v394 = vadd.f32 %v325, %v393
      %v395 = vpop.f32.mrb[0].mxu0
      %396 = vmatprep.mubr.f32.mxu0 0.0
      %397 = vmatmul.mubr.f32.gmra.mrb[0].mxu0 %v297
      %v398 = vpop.f32.mrb[0].mxu0
      %v399 = vadd.f32 %v325, %v398
      %v400 = vpop.f32.mrb[0].mxu0
      %401 = vmatprep.mubr.f32.mxu0 0.0
      %402 = vmatmul.mubr.f32.gmra.mrb[0].mxu0 %v298
      %v403 = vpop.f32.mrb[0].mxu0
      %v404 = vadd.f32 %v325, %v403
      %v405 = vpop.f32.mrb[0].mxu0
      %406 = vmatprep.mubr.f32.mxu0 0.0
      %407 = vmatmul.mubr.f32.gmra.mrb[0].mxu0 %v299
      %v408 = vpop.f32.mrb[0].mxu0
      %v409 = vadd.f32 %v325, %v408
      %v410 = vpop.f32.mrb[0].mxu0
      %411 = vmatprep.mubr.f32.mxu0 0.0
      %412 = vmatmul.mubr.f32.gmra.mrb[0].mxu0 %v300
      %v413 = vpop.f32.mrb[0].mxu0
      %v414 = vadd.f32 %v325, %v413
      %v415 = vpop.f32.mrb[0].mxu0
      %416 = vmatprep.mubr.f32.mxu0 0.0
      %417 = vmatmul.mubr.f32.gmra.mrb[0].mxu0 %v301
      %v418 = vpop.f32.mrb[0].mxu0
      %v419 = vadd.f32 %v325, %v418
      %v420 = vpop.f32.mrb[0].mxu0
      %421 = vmatprep.mubr.f32.mxu0 0.0
      %422 = vmatmul.mubr.f32.gmra.mrb[0].mxu0 %v302
      %v423 = vpop.f32.mrb[0].mxu0
      %v424 = vadd.f32 %v325, %v423
      %v425 = vpop.f32.mrb[0].mxu0
      %426 = vmatprep.mubr.f32.mxu0 0.0
      %427 = vmatmul.mubr.f32.gmra.mrb[0].mxu0 %v303
      %v428 = vpop.f32.mrb[0].mxu0
      %v429 = vadd.f32 %v325, %v428
      %v430 = vpop.f32.mrb[0].mxu0
      %431 = vdwg.mxu0
      %432 = vst [vmem:[#allocation3] sm:$0xff] %v394
      %433 = vst [vmem:[#allocation3 + $0x8] sm:$0xff] %v399
      %434 = vst [vmem:[#allocation3 + $0x10] sm:$0xff] %v404
      %435 = vst [vmem:[#allocation3 + $0x18] sm:$0xff] %v409
      %436 = vst [vmem:[#allocation3 + $0x20] sm:$0xff] %v414
      %437 = vst [vmem:[#allocation3 + $0x28] sm:$0xff] %v419
      %438 = vst [vmem:[#allocation3 + $0x30] sm:$0xff] %v424
      %439 = vst [vmem:[#allocation3 + $0x38] sm:$0xff] %v429
      %v440 = vld [vmem:[#allocation2] sm:$0xff]
      %v441 = vld [vmem:[#allocation3] sm:$0xff]
      %v442 = vld [vmem:[%s2] sm:$0xff]
      %v443 = vld [vmem:[%s2 + $0x8] sm:$0xff]
      %v444 = vld [vmem:[%s2 + $0x10] sm:$0xff]
      %v445 = vld [vmem:[%s2 + $0x18] sm:$0xff]
      %v446 = vld [vmem:[%s2 + $0x20] sm:$0xff]
      %v447 = vld [vmem:[%s2 + $0x28] sm:$0xff]
      %v448 = vld [vmem:[%s2 + $0x30] sm:$0xff]
      %v449 = vld [vmem:[%s2 + $0x38] sm:$0xff]
      %v450 = vld [vmem:[%s2 + $0x40] sm:$0xff]
      %v451 = vld [vmem:[%s2 + $0x48] sm:$0xff]
      %v452 = vld [vmem:[%s2 + $0x50] sm:$0xff]
      %v453 = vld [vmem:[%s2 + $0x58] sm:$0xff]
      %v454 = vld [vmem:[%s2 + $0x60] sm:$0xff]
      %v455 = vld [vmem:[%s2 + $0x68] sm:$0xff]
      %v456 = vld [vmem:[%s2 + $0x70] sm:$0xff]
      %v457 = vld [vmem:[%s2 + $0x78] sm:$0xff]
      %458 = vmatprep.subr.mxu0 0.0
      %459 = vmatpush1.msra.mxu0 %v442
      %460 = vmatprep.subr.mxu0 0.0
      %461 = vmatpush1.msra.mxu0 %v443
      %462 = vmatprep.subr.mxu0 0.0
      %463 = vmatpush1.msra.mxu0 %v444
      %464 = vmatprep.subr.mxu0 0.0
      %465 = vmatpush1.msra.mxu0 %v445
      %466 = vmatprep.subr.mxu0 0.0
      %467 = vmatpush1.msra.mxu0 %v446
      %468 = vmatprep.subr.mxu0 0.0
      %469 = vmatpush1.msra.mxu0 %v447
      %470 = vmatprep.subr.mxu0 0.0
      %471 = vmatpush1.msra.mxu0 %v448
      %472 = vmatprep.subr.mxu0 0.0
      %473 = vmatpush1.msra.mxu0 %v449
      %474 = vmatprep.subr.mxu0 0.0
      %475 = vmatpush1.msra.mxu0 %v450
      %476 = vmatprep.subr.mxu0 0.0
      %477 = vmatpush1.msra.mxu0 %v451
      %478 = vmatprep.subr.mxu0 0.0
      %479 = vmatpush1.msra.mxu0 %v452
      %480 = vmatprep.subr.mxu0 0.0
      %481 = vmatpush1.msra.mxu0 %v453
      %482 = vmatprep.subr.mxu0 0.0
      %483 = vmatpush1.msra.mxu0 %v454
      %484 = vmatprep.subr.mxu0 0.0
      %485 = vmatpush1.msra.mxu0 %v455
      %486 = vmatprep.subr.mxu0 0.0
      %487 = vmatpush1.msra.mxu0 %v456
      %488 = vmatprep.subr.mxu0 0.0
      %489 = vmatpush1.msra.mxu0 %v457
      %490 = vmatprep.subr.mxu0 0.0
      %491 = vmatpush1.msra.mxu0 0.0
      %492 = vmatprep.subr.mxu0 0.0
      %493 = vmatpush1.msra.mxu0 0.0
      %494 = vmatprep.subr.mxu0 0.0
      %495 = vmatpush1.msra.mxu0 0.0
      %496 = vmatprep.subr.mxu0 0.0
      %497 = vmatpush1.msra.mxu0 0.0
      %498 = vmatprep.subr.mxu0 0.0
      %499 = vmatpush1.msra.mxu0 0.0
      %500 = vmatprep.subr.mxu0 0.0
      %501 = vmatpush1.msra.mxu0 0.0
      %502 = vmatprep.subr.mxu0 0.0
      %503 = vmatpush1.msra.mxu0 0.0
      %504 = vmatprep.subr.mxu0 0.0
      %505 = vmatpush1.msra.mxu0 0.0
      %506 = vmatprep.subr.mxu0 0.0
      %507 = vmatpush1.msra.mxu0 0.0
      %508 = vmatprep.subr.mxu0 0.0
      %509 = vmatpush1.msra.mxu0 0.0
      %510 = vmatprep.subr.mxu0 0.0
      %511 = vmatpush1.msra.mxu0 0.0
      %512 = vmatprep.subr.mxu0 0.0
      %513 = vmatpush1.msra.mxu0 0.0
      %514 = vmatprep.subr.mxu0 0.0
      %515 = vmatpush1.msra.mxu0 0.0
      %516 = vmatprep.subr.mxu0 0.0
      %517 = vmatpush1.msra.mxu0 0.0
      %518 = vmatprep.subr.mxu0 0.0
      %519 = vmatpush1.msra.mxu0 0.0
      %520 = vmatprep.subr.mxu0 0.0
      %521 = vmatpush1.msra.mxu0 0.0
      %522 = vmatprep.mubr.f32.mxu0 0.0
      %523 = vmatmul.mubr.f32.gmra.mrb[0].mxu0 %v440
      %v524 = vpop.f32.mrb[0].mxu0
      %v525 = vadd.f32 0.0, %v524
      %v526 = vpop.f32.mrb[0].mxu0
      %527 = vdwg.mxu0
      %v528 = vadd.f32 %v441, %v525
      %v529 = vtanh.pop %v528
      %530 = vst [vmem:[#allocation4] sm:$0xff] %v529
      %s531 = scalar_lea.vmem [#allocation3], 8
      %v532 = vld [vmem:[%s531] sm:$0xff]
      %v533 = vld [vmem:[%s2] sm:$0xff]
      %v534 = vld [vmem:[%s2 + $0x8] sm:$0xff]
      %v535 = vld [vmem:[%s2 + $0x10] sm:$0xff]
      %v536 = vld [vmem:[%s2 + $0x18] sm:$0xff]
      %v537 = vld [vmem:[%s2 + $0x20] sm:$0xff]
      %v538 = vld [vmem:[%s2 + $0x28] sm:$0xff]
      %v539 = vld [vmem:[%s2 + $0x30] sm:$0xff]
      %v540 = vld [vmem:[%s2 + $0x38] sm:$0xff]
      %v541 = vld [vmem:[%s2 + $0x40] sm:$0xff]
      %v542 = vld [vmem:[%s2 + $0x48] sm:$0xff]
      %v543 = vld [vmem:[%s2 + $0x50] sm:$0xff]
      %v544 = vld [vmem:[%s2 + $0x58] sm:$0xff]
      %v545 = vld [vmem:[%s2 + $0x60] sm:$0xff]
      %v546 = vld [vmem:[%s2 + $0x68] sm:$0xff]
      %v547 = vld [vmem:[%s2 + $0x70] sm:$0xff]
      %v548 = vld [vmem:[%s2 + $0x78] sm:$0xff]
      %549 = vmatprep.subr.mxu0 0.0
      %550 = vmatpush1.msra.mxu0 %v533
      %551 = vmatprep.subr.mxu0 0.0
      %552 = vmatpush1.msra.mxu0 %v534
      %553 = vmatprep.subr.mxu0 0.0
      %554 = vmatpush1.msra.mxu0 %v535
      %555 = vmatprep.subr.mxu0 0.0
      %556 = vmatpush1.msra.mxu0 %v536
      %557 = vmatprep.subr.mxu0 0.0
      %558 = vmatpush1.msra.mxu0 %v537
      %559 = vmatprep.subr.mxu0 0.0
      %560 = vmatpush1.msra.mxu0 %v538
      %561 = vmatprep.subr.mxu0 0.0
      %562 = vmatpush1.msra.mxu0 %v539
      %563 = vmatprep.subr.mxu0 0.0
      %564 = vmatpush1.msra.mxu0 %v540
      %565 = vmatprep.subr.mxu0 0.0
      %566 = vmatpush1.msra.mxu0 %v541
      %567 = vmatprep.subr.mxu0 0.0
      %568 = vmatpush1.msra.mxu0 %v542
      %569 = vmatprep.subr.mxu0 0.0
      %570 = vmatpush1.msra.mxu0 %v543
      %571 = vmatprep.subr.mxu0 0.0
      %572 = vmatpush1.msra.mxu0 %v544
      %573 = vmatprep.subr.mxu0 0.0
      %574 = vmatpush1.msra.mxu0 %v545
      %575 = vmatprep.subr.mxu0 0.0
      %576 = vmatpush1.msra.mxu0 %v546
      %577 = vmatprep.subr.mxu0 0.0
      %578 = vmatpush1.msra.mxu0 %v547
      %579 = vmatprep.subr.mxu0 0.0
      %580 = vmatpush1.msra.mxu0 %v548
      %581 = vmatprep.subr.mxu0 0.0
      %582 = vmatpush1.msra.mxu0 0.0
      %583 = vmatprep.subr.mxu0 0.0
      %584 = vmatpush1.msra.mxu0 0.0
      %585 = vmatprep.subr.mxu0 0.0
      %586 = vmatpush1.msra.mxu0 0.0
      %587 = vmatprep.subr.mxu0 0.0
      %588 = vmatpush1.msra.mxu0 0.0
      %589 = vmatprep.subr.mxu0 0.0
      %590 = vmatpush1.msra.mxu0 0.0
      %591 = vmatprep.subr.mxu0 0.0
      %592 = vmatpush1.msra.mxu0 0.0
      %593 = vmatprep.subr.mxu0 0.0
      %594 = vmatpush1.msra.mxu0 0.0
      %595 = vmatprep.subr.mxu0 0.0
      %596 = vmatpush1.msra.mxu0 0.0
      %597 = vmatprep.subr.mxu0 0.0
      %598 = vmatpush1.msra.mxu0 0.0
      %599 = vmatprep.subr.mxu0 0.0
      %600 = vmatpush1.msra.mxu0 0.0
      %601 = vmatprep.subr.mxu0 0.0
      %602 = vmatpush1.msra.mxu0 0.0
      %603 = vmatprep.subr.mxu0 0.0
      %604 = vmatpush1.msra.mxu0 0.0
      %605 = vmatprep.subr.mxu0 0.0
      %606 = vmatpush1.msra.mxu0 0.0
      %607 = vmatprep.subr.mxu0 0.0
      %608 = vmatpush1.msra.mxu0 0.0
      %609 = vmatprep.subr.mxu0 0.0
      %610 = vmatpush1.msra.mxu0 0.0
      %611 = vmatprep.subr.mxu0 0.0
      %612 = vmatpush1.msra.mxu0 0.0
      %613 = vmatprep.mubr.f32.mxu0 0.0
      %614 = vmatmul.mubr.f32.gmra.mrb[0].mxu0 %v529
      %v615 = vpop.f32.mrb[0].mxu0
      %v616 = vadd.f32 0.0, %v615
      %v617 = vpop.f32.mrb[0].mxu0
      %618 = vdwg.mxu0
      %v619 = vadd.f32 %v532, %v616
      %v620 = vtanh.pop %v619
      %s621 = scalar_lea.vmem [#allocation4], 8
      %622 = vst [vmem:[%s621] sm:$0xff] %v620
      %s623 = scalar_lea.vmem [#allocation3], 16
      %v624 = vld [vmem:[%s623] sm:$0xff]
      %v625 = vld [vmem:[%s2] sm:$0xff]
      %v626 = vld [vmem:[%s2 + $0x8] sm:$0xff]
      %v627 = vld [vmem:[%s2 + $0x10] sm:$0xff]
      %v628 = vld [vmem:[%s2 + $0x18] sm:$0xff]
      %v629 = vld [vmem:[%s2 + $0x20] sm:$0xff]
      %v630 = vld [vmem:[%s2 + $0x28] sm:$0xff]
      %v631 = vld [vmem:[%s2 + $0x30] sm:$0xff]
      %v632 = vld [vmem:[%s2 + $0x38] sm:$0xff]
      %v633 = vld [vmem:[%s2 + $0x40] sm:$0xff]
      %v634 = vld [vmem:[%s2 + $0x48] sm:$0xff]
      %v635 = vld [vmem:[%s2 + $0x50] sm:$0xff]
      %v636 = vld [vmem:[%s2 + $0x58] sm:$0xff]
      %v637 = vld [vmem:[%s2 + $0x60] sm:$0xff]
      %v638 = vld [vmem:[%s2 + $0x68] sm:$0xff]
      %v639 = vld [vmem:[%s2 + $0x70] sm:$0xff]
      %v640 = vld [vmem:[%s2 + $0x78] sm:$0xff]
      %641 = vmatprep.subr.mxu0 0.0
      %642 = vmatpush1.msra.mxu0 %v625
      %643 = vmatprep.subr.mxu0 0.0
      %644 = vmatpush1.msra.mxu0 %v626
      %645 = vmatprep.subr.mxu0 0.0
      %646 = vmatpush1.msra.mxu0 %v627
      %647 = vmatprep.subr.mxu0 0.0
      %648 = vmatpush1.msra.mxu0 %v628
      %649 = vmatprep.subr.mxu0 0.0
      %650 = vmatpush1.msra.mxu0 %v629
      %651 = vmatprep.subr.mxu0 0.0
      %652 = vmatpush1.msra.mxu0 %v630
      %653 = vmatprep.subr.mxu0 0.0
      %654 = vmatpush1.msra.mxu0 %v631
      %655 = vmatprep.subr.mxu0 0.0
      %656 = vmatpush1.msra.mxu0 %v632
      %657 = vmatprep.subr.mxu0 0.0
      %658 = vmatpush1.msra.mxu0 %v633
      %659 = vmatprep.subr.mxu0 0.0
      %660 = vmatpush1.msra.mxu0 %v634
      %661 = vmatprep.subr.mxu0 0.0
      %662 = vmatpush1.msra.mxu0 %v635
      %663 = vmatprep.subr.mxu0 0.0
      %664 = vmatpush1.msra.mxu0 %v636
      %665 = vmatprep.subr.mxu0 0.0
      %666 = vmatpush1.msra.mxu0 %v637
      %667 = vmatprep.subr.mxu0 0.0
      %668 = vmatpush1.msra.mxu0 %v638
      %669 = vmatprep.subr.mxu0 0.0
      %670 = vmatpush1.msra.mxu0 %v639
      %671 = vmatprep.subr.mxu0 0.0
      %672 = vmatpush1.msra.mxu0 %v640
      %673 = vmatprep.subr.mxu0 0.0
      %674 = vmatpush1.msra.mxu0 0.0
      %675 = vmatprep.subr.mxu0 0.0
      %676 = vmatpush1.msra.mxu0 0.0
      %677 = vmatprep.subr.mxu0 0.0
      %678 = vmatpush1.msra.mxu0 0.0
      %679 = vmatprep.subr.mxu0 0.0
      %680 = vmatpush1.msra.mxu0 0.0
      %681 = vmatprep.subr.mxu0 0.0
      %682 = vmatpush1.msra.mxu0 0.0
      %683 = vmatprep.subr.mxu0 0.0
      %684 = vmatpush1.msra.mxu0 0.0
      %685 = vmatprep.subr.mxu0 0.0
      %686 = vmatpush1.msra.mxu0 0.0
      %687 = vmatprep.subr.mxu0 0.0
      %688 = vmatpush1.msra.mxu0 0.0
      %689 = vmatprep.subr.mxu0 0.0
      %690 = vmatpush1.msra.mxu0 0.0
      %691 = vmatprep.subr.mxu0 0.0
      %692 = vmatpush1.msra.mxu0 0.0
      %693 = vmatprep.subr.mxu0 0.0
      %694 = vmatpush1.msra.mxu0 0.0
      %695 = vmatprep.subr.mxu0 0.0
      %696 = vmatpush1.msra.mxu0 0.0
      %697 = vmatprep.subr.mxu0 0.0
      %698 = vmatpush1.msra.mxu0 0.0
      %699 = vmatprep.subr.mxu0 0.0
      %700 = vmatpush1.msra.mxu0 0.0
      %701 = vmatprep.subr.mxu0 0.0
      %702 = vmatpush1.msra.mxu0 0.0
      %703 = vmatprep.subr.mxu0 0.0
      %704 = vmatpush1.msra.mxu0 0.0
      %705 = vmatprep.mubr.f32.mxu0 0.0
      %706 = vmatmul.mubr.f32.gmra.mrb[0].mxu0 %v620
      %v707 = vpop.f32.mrb[0].mxu0
      %v708 = vadd.f32 0.0, %v707
      %v709 = vpop.f32.mrb[0].mxu0
      %710 = vdwg.mxu0
      %v711 = vadd.f32 %v624, %v708
      %v712 = vtanh.pop %v711
      %s713 = scalar_lea.vmem [#allocation4], 16
      %714 = vst [vmem:[%s713] sm:$0xff] %v712
      %s715 = scalar_lea.vmem [#allocation3], 24
      %v716 = vld [vmem:[%s715] sm:$0xff]
      %v717 = vld [vmem:[%s2] sm:$0xff]
      %v718 = vld [vmem:[%s2 + $0x8] sm:$0xff]
      %v719 = vld [vmem:[%s2 + $0x10] sm:$0xff]
      %v720 = vld [vmem:[%s2 + $0x18] sm:$0xff]
      %v721 = vld [vmem:[%s2 + $0x20] sm:$0xff]
      %v722 = vld [vmem:[%s2 + $0x28] sm:$0xff]
      %v723 = vld [vmem:[%s2 + $0x30] sm:$0xff]
      %v724 = vld [vmem:[%s2 + $0x38] sm:$0xff]
      %v725 = vld [vmem:[%s2 + $0x40] sm:$0xff]
      %v726 = vld [vmem:[%s2 + $0x48] sm:$0xff]
      %v727 = vld [vmem:[%s2 + $0x50] sm:$0xff]
      %v728 = vld [vmem:[%s2 + $0x58] sm:$0xff]
      %v729 = vld [vmem:[%s2 + $0x60] sm:$0xff]
      %v730 = vld [vmem:[%s2 + $0x68] sm:$0xff]
      %v731 = vld [vmem:[%s2 + $0x70] sm:$0xff]
      %v732 = vld [vmem:[%s2 + $0x78] sm:$0xff]
      %733 = vmatprep.subr.mxu0 0.0
      %734 = vmatpush1.msra.mxu0 %v717
      %735 = vmatprep.subr.mxu0 0.0
      %736 = vmatpush1.msra.mxu0 %v718
      %737 = vmatprep.subr.mxu0 0.0
      %738 = vmatpush1.msra.mxu0 %v719
      %739 = vmatprep.subr.mxu0 0.0
      %740 = vmatpush1.msra.mxu0 %v720
      %741 = vmatprep.subr.mxu0 0.0
      %742 = vmatpush1.msra.mxu0 %v721
      %743 = vmatprep.subr.mxu0 0.0
      %744 = vmatpush1.msra.mxu0 %v722
      %745 = vmatprep.subr.mxu0 0.0
      %746 = vmatpush1.msra.mxu0 %v723
      %747 = vmatprep.subr.mxu0 0.0
      %748 = vmatpush1.msra.mxu0 %v724
      %749 = vmatprep.subr.mxu0 0.0
      %750 = vmatpush1.msra.mxu0 %v725
      %751 = vmatprep.subr.mxu0 0.0
      %752 = vmatpush1.msra.mxu0 %v726
      %753 = vmatprep.subr.mxu0 0.0
      %754 = vmatpush1.msra.mxu0 %v727
      %755 = vmatprep.subr.mxu0 0.0
      %756 = vmatpush1.msra.mxu0 %v728
      %757 = vmatprep.subr.mxu0 0.0
      %758 = vmatpush1.msra.mxu0 %v729
      %759 = vmatprep.subr.mxu0 0.0
      %760 = vmatpush1.msra.mxu0 %v730
      %761 = vmatprep.subr.mxu0 0.0
      %762 = vmatpush1.msra.mxu0 %v731
      %763 = vmatprep.subr.mxu0 0.0
      %764 = vmatpush1.msra.mxu0 %v732
      %765 = vmatprep.subr.mxu0 0.0
      %766 = vmatpush1.msra.mxu0 0.0
      %767 = vmatprep.subr.mxu0 0.0
      %768 = vmatpush1.msra.mxu0 0.0
      %769 = vmatprep.subr.mxu0 0.0
      %770 = vmatpush1.msra.mxu0 0.0
      %771 = vmatprep.subr.mxu0 0.0
      %772 = vmatpush1.msra.mxu0 0.0
      %773 = vmatprep.subr.mxu0 0.0
      %774 = vmatpush1.msra.mxu0 0.0
      %775 = vmatprep.subr.mxu0 0.0
      %776 = vmatpush1.msra.mxu0 0.0
      %777 = vmatprep.subr.mxu0 0.0
      %778 = vmatpush1.msra.mxu0 0.0
      %779 = vmatprep.subr.mxu0 0.0
      %780 = vmatpush1.msra.mxu0 0.0
      %781 = vmatprep.subr.mxu0 0.0
      %782 = vmatpush1.msra.mxu0 0.0
      %783 = vmatprep.subr.mxu0 0.0
      %784 = vmatpush1.msra.mxu0 0.0
      %785 = vmatprep.subr.mxu0 0.0
      %786 = vmatpush1.msra.mxu0 0.0
      %787 = vmatprep.subr.mxu0 0.0
      %788 = vmatpush1.msra.mxu0 0.0
      %789 = vmatprep.subr.mxu0 0.0
      %790 = vmatpush1.msra.mxu0 0.0
      %791 = vmatprep.subr.mxu0 0.0
      %792 = vmatpush1.msra.mxu0 0.0
      %793 = vmatprep.subr.mxu0 0.0
      %794 = vmatpush1.msra.mxu0 0.0
      %795 = vmatprep.subr.mxu0 0.0
      %796 = vmatpush1.msra.mxu0 0.0
      %797 = vmatprep.mubr.f32.mxu0 0.0
      %798 = vmatmul.mubr.f32.gmra.mrb[0].mxu0 %v712
      %v799 = vpop.f32.mrb[0].mxu0
      %v800 = vadd.f32 0.0, %v799
      %v801 = vpop.f32.mrb[0].mxu0
      %802 = vdwg.mxu0
      %v803 = vadd.f32 %v716, %v800
      %v804 = vtanh.pop %v803
      %s805 = scalar_lea.vmem [#allocation4], 24
      %806 = vst [vmem:[%s805] sm:$0xff] %v804
      %s807 = scalar_lea.vmem [#allocation3], 32
      %v808 = vld [vmem:[%s807] sm:$0xff]
      %v809 = vld [vmem:[%s2] sm:$0xff]
      %v810 = vld [vmem:[%s2 + $0x8] sm:$0xff]
      %v811 = vld [vmem:[%s2 + $0x10] sm:$0xff]
      %v812 = vld [vmem:[%s2 + $0x18] sm:$0xff]
      %v813 = vld [vmem:[%s2 + $0x20] sm:$0xff]
      %v814 = vld [vmem:[%s2 + $0x28] sm:$0xff]
      %v815 = vld [vmem:[%s2 + $0x30] sm:$0xff]
      %v816 = vld [vmem:[%s2 + $0x38] sm:$0xff]
      %v817 = vld [vmem:[%s2 + $0x40] sm:$0xff]
      %v818 = vld [vmem:[%s2 + $0x48] sm:$0xff]
      %v819 = vld [vmem:[%s2 + $0x50] sm:$0xff]
      %v820 = vld [vmem:[%s2 + $0x58] sm:$0xff]
      %v821 = vld [vmem:[%s2 + $0x60] sm:$0xff]
      %v822 = vld [vmem:[%s2 + $0x68] sm:$0xff]
      %v823 = vld [vmem:[%s2 + $0x70] sm:$0xff]
      %v824 = vld [vmem:[%s2 + $0x78] sm:$0xff]
      %825 = vmatprep.subr.mxu0 0.0
      %826 = vmatpush1.msra.mxu0 %v809
      %827 = vmatprep.subr.mxu0 0.0
      %828 = vmatpush1.msra.mxu0 %v810
      %829 = vmatprep.subr.mxu0 0.0
      %830 = vmatpush1.msra.mxu0 %v811
      %831 = vmatprep.subr.mxu0 0.0
      %832 = vmatpush1.msra.mxu0 %v812
      %833 = vmatprep.subr.mxu0 0.0
      %834 = vmatpush1.msra.mxu0 %v813
      %835 = vmatprep.subr.mxu0 0.0
      %836 = vmatpush1.msra.mxu0 %v814
      %837 = vmatprep.subr.mxu0 0.0
      %838 = vmatpush1.msra.mxu0 %v815
      %839 = vmatprep.subr.mxu0 0.0
      %840 = vmatpush1.msra.mxu0 %v816
      %841 = vmatprep.subr.mxu0 0.0
      %842 = vmatpush1.msra.mxu0 %v817
      %843 = vmatprep.subr.mxu0 0.0
      %844 = vmatpush1.msra.mxu0 %v818
      %845 = vmatprep.subr.mxu0 0.0
      %846 = vmatpush1.msra.mxu0 %v819
      %847 = vmatprep.subr.mxu0 0.0
      %848 = vmatpush1.msra.mxu0 %v820
      %849 = vmatprep.subr.mxu0 0.0
      %850 = vmatpush1.msra.mxu0 %v821
      %851 = vmatprep.subr.mxu0 0.0
      %852 = vmatpush1.msra.mxu0 %v822
      %853 = vmatprep.subr.mxu0 0.0
      %854 = vmatpush1.msra.mxu0 %v823
      %855 = vmatprep.subr.mxu0 0.0
      %856 = vmatpush1.msra.mxu0 %v824
      %857 = vmatprep.subr.mxu0 0.0
      %858 = vmatpush1.msra.mxu0 0.0
      %859 = vmatprep.subr.mxu0 0.0
      %860 = vmatpush1.msra.mxu0 0.0
      %861 = vmatprep.subr.mxu0 0.0
      %862 = vmatpush1.msra.mxu0 0.0
      %863 = vmatprep.subr.mxu0 0.0
      %864 = vmatpush1.msra.mxu0 0.0
      %865 = vmatprep.subr.mxu0 0.0
      %866 = vmatpush1.msra.mxu0 0.0
      %867 = vmatprep.subr.mxu0 0.0
      %868 = vmatpush1.msra.mxu0 0.0
      %869 = vmatprep.subr.mxu0 0.0
      %870 = vmatpush1.msra.mxu0 0.0
      %871 = vmatprep.subr.mxu0 0.0
      %872 = vmatpush1.msra.mxu0 0.0
      %873 = vmatprep.subr.mxu0 0.0
      %874 = vmatpush1.msra.mxu0 0.0
      %875 = vmatprep.subr.mxu0 0.0
      %876 = vmatpush1.msra.mxu0 0.0
      %877 = vmatprep.subr.mxu0 0.0
      %878 = vmatpush1.msra.mxu0 0.0
      %879 = vmatprep.subr.mxu0 0.0
      %880 = vmatpush1.msra.mxu0 0.0
      %881 = vmatprep.subr.mxu0 0.0
      %882 = vmatpush1.msra.mxu0 0.0
      %883 = vmatprep.subr.mxu0 0.0
      %884 = vmatpush1.msra.mxu0 0.0
      %885 = vmatprep.subr.mxu0 0.0
      %886 = vmatpush1.msra.mxu0 0.0
      %887 = vmatprep.subr.mxu0 0.0
      %888 = vmatpush1.msra.mxu0 0.0
      %889 = vmatprep.mubr.f32.mxu0 0.0
      %890 = vmatmul.mubr.f32.gmra.mrb[0].mxu0 %v804
      %v891 = vpop.f32.mrb[0].mxu0
      %v892 = vadd.f32 0.0, %v891
      %v893 = vpop.f32.mrb[0].mxu0
      %894 = vdwg.mxu0
      %v895 = vadd.f32 %v808, %v892
      %v896 = vtanh.pop %v895
      %s897 = scalar_lea.vmem [#allocation4], 32
      %898 = vst [vmem:[%s897] sm:$0xff] %v896
      %s899 = scalar_lea.vmem [#allocation3], 40
      %v900 = vld [vmem:[%s899] sm:$0xff]
      %v901 = vld [vmem:[%s2] sm:$0xff]
      %v902 = vld [vmem:[%s2 + $0x8] sm:$0xff]
      %v903 = vld [vmem:[%s2 + $0x10] sm:$0xff]
      %v904 = vld [vmem:[%s2 + $0x18] sm:$0xff]
      %v905 = vld [vmem:[%s2 + $0x20] sm:$0xff]
      %v906 = vld [vmem:[%s2 + $0x28] sm:$0xff]
      %v907 = vld [vmem:[%s2 + $0x30] sm:$0xff]
      %v908 = vld [vmem:[%s2 + $0x38] sm:$0xff]
      %v909 = vld [vmem:[%s2 + $0x40] sm:$0xff]
      %v910 = vld [vmem:[%s2 + $0x48] sm:$0xff]
      %v911 = vld [vmem:[%s2 + $0x50] sm:$0xff]
      %v912 = vld [vmem:[%s2 + $0x58] sm:$0xff]
      %v913 = vld [vmem:[%s2 + $0x60] sm:$0xff]
      %v914 = vld [vmem:[%s2 + $0x68] sm:$0xff]
      %v915 = vld [vmem:[%s2 + $0x70] sm:$0xff]
      %v916 = vld [vmem:[%s2 + $0x78] sm:$0xff]
      %917 = vmatprep.subr.mxu0 0.0
      %918 = vmatpush1.msra.mxu0 %v901
      %919 = vmatprep.subr.mxu0 0.0
      %920 = vmatpush1.msra.mxu0 %v902
      %921 = vmatprep.subr.mxu0 0.0
      %922 = vmatpush1.msra.mxu0 %v903
      %923 = vmatprep.subr.mxu0 0.0
      %924 = vmatpush1.msra.mxu0 %v904
      %925 = vmatprep.subr.mxu0 0.0
      %926 = vmatpush1.msra.mxu0 %v905
      %927 = vmatprep.subr.mxu0 0.0
      %928 = vmatpush1.msra.mxu0 %v906
      %929 = vmatprep.subr.mxu0 0.0
      %930 = vmatpush1.msra.mxu0 %v907
      %931 = vmatprep.subr.mxu0 0.0
      %932 = vmatpush1.msra.mxu0 %v908
      %933 = vmatprep.subr.mxu0 0.0
      %934 = vmatpush1.msra.mxu0 %v909
      %935 = vmatprep.subr.mxu0 0.0
      %936 = vmatpush1.msra.mxu0 %v910
      %937 = vmatprep.subr.mxu0 0.0
      %938 = vmatpush1.msra.mxu0 %v911
      %939 = vmatprep.subr.mxu0 0.0
      %940 = vmatpush1.msra.mxu0 %v912
      %941 = vmatprep.subr.mxu0 0.0
      %942 = vmatpush1.msra.mxu0 %v913
      %943 = vmatprep.subr.mxu0 0.0
      %944 = vmatpush1.msra.mxu0 %v914
      %945 = vmatprep.subr.mxu0 0.0
      %946 = vmatpush1.msra.mxu0 %v915
      %947 = vmatprep.subr.mxu0 0.0
      %948 = vmatpush1.msra.mxu0 %v916
      %949 = vmatprep.subr.mxu0 0.0
      %950 = vmatpush1.msra.mxu0 0.0
      %951 = vmatprep.subr.mxu0 0.0
      %952 = vmatpush1.msra.mxu0 0.0
      %953 = vmatprep.subr.mxu0 0.0
      %954 = vmatpush1.msra.mxu0 0.0
      %955 = vmatprep.subr.mxu0 0.0
      %956 = vmatpush1.msra.mxu0 0.0
      %957 = vmatprep.subr.mxu0 0.0
      %958 = vmatpush1.msra.mxu0 0.0
      %959 = vmatprep.subr.mxu0 0.0
      %960 = vmatpush1.msra.mxu0 0.0
      %961 = vmatprep.subr.mxu0 0.0
      %962 = vmatpush1.msra.mxu0 0.0
      %963 = vmatprep.subr.mxu0 0.0
      %964 = vmatpush1.msra.mxu0 0.0
      %965 = vmatprep.subr.mxu0 0.0
      %966 = vmatpush1.msra.mxu0 0.0
      %967 = vmatprep.subr.mxu0 0.0
      %968 = vmatpush1.msra.mxu0 0.0
      %969 = vmatprep.subr.mxu0 0.0
      %970 = vmatpush1.msra.mxu0 0.0
      %971 = vmatprep.subr.mxu0 0.0
      %972 = vmatpush1.msra.mxu0 0.0
      %973 = vmatprep.subr.mxu0 0.0
      %974 = vmatpush1.msra.mxu0 0.0
      %975 = vmatprep.subr.mxu0 0.0
      %976 = vmatpush1.msra.mxu0 0.0
      %977 = vmatprep.subr.mxu0 0.0
      %978 = vmatpush1.msra.mxu0 0.0
      %979 = vmatprep.subr.mxu0 0.0
      %980 = vmatpush1.msra.mxu0 0.0
      %981 = vmatprep.mubr.f32.mxu0 0.0
      %982 = vmatmul.mubr.f32.gmra.mrb[0].mxu0 %v896
      %v983 = vpop.f32.mrb[0].mxu0
      %v984 = vadd.f32 0.0, %v983
      %v985 = vpop.f32.mrb[0].mxu0
      %986 = vdwg.mxu0
      %v987 = vadd.f32 %v900, %v984
      %v988 = vtanh.pop %v987
      %s989 = scalar_lea.vmem [#allocation4], 40
      %990 = vst [vmem:[%s989] sm:$0xff] %v988
      %s991 = scalar_lea.vmem [#allocation3], 48
      %v992 = vld [vmem:[%s991] sm:$0xff]
      %v993 = vld [vmem:[%s2] sm:$0xff]
      %v994 = vld [vmem:[%s2 + $0x8] sm:$0xff]
      %v995 = vld [vmem:[%s2 + $0x10] sm:$0xff]
      %v996 = vld [vmem:[%s2 + $0x18] sm:$0xff]
      %v997 = vld [vmem:[%s2 + $0x20] sm:$0xff]
      %v998 = vld [vmem:[%s2 + $0x28] sm:$0xff]
      %v999 = vld [vmem:[%s2 + $0x30] sm:$0xff]
      %v1000 = vld [vmem:[%s2 + $0x38] sm:$0xff]
      %v1001 = vld [vmem:[%s2 + $0x40] sm:$0xff]
      %v1002 = vld [vmem:[%s2 + $0x48] sm:$0xff]
      %v1003 = vld [vmem:[%s2 + $0x50] sm:$0xff]
      %v1004 = vld [vmem:[%s2 + $0x58] sm:$0xff]
      %v1005 = vld [vmem:[%s2 + $0x60] sm:$0xff]
      %v1006 = vld [vmem:[%s2 + $0x68] sm:$0xff]
      %v1007 = vld [vmem:[%s2 + $0x70] sm:$0xff]
      %v1008 = vld [vmem:[%s2 + $0x78] sm:$0xff]
      %1009 = vmatprep.subr.mxu0 0.0
      %1010 = vmatpush1.msra.mxu0 %v993
      %1011 = vmatprep.subr.mxu0 0.0
      %1012 = vmatpush1.msra.mxu0 %v994
      %1013 = vmatprep.subr.mxu0 0.0
      %1014 = vmatpush1.msra.mxu0 %v995
      %1015 = vmatprep.subr.mxu0 0.0
      %1016 = vmatpush1.msra.mxu0 %v996
      %1017 = vmatprep.subr.mxu0 0.0
      %1018 = vmatpush1.msra.mxu0 %v997
      %1019 = vmatprep.subr.mxu0 0.0
      %1020 = vmatpush1.msra.mxu0 %v998
      %1021 = vmatprep.subr.mxu0 0.0
      %1022 = vmatpush1.msra.mxu0 %v999
      %1023 = vmatprep.subr.mxu0 0.0
      %1024 = vmatpush1.msra.mxu0 %v1000
      %1025 = vmatprep.subr.mxu0 0.0
      %1026 = vmatpush1.msra.mxu0 %v1001
      %1027 = vmatprep.subr.mxu0 0.0
      %1028 = vmatpush1.msra.mxu0 %v1002
      %1029 = vmatprep.subr.mxu0 0.0
      %1030 = vmatpush1.msra.mxu0 %v1003
      %1031 = vmatprep.subr.mxu0 0.0
      %1032 = vmatpush1.msra.mxu0 %v1004
      %1033 = vmatprep.subr.mxu0 0.0
      %1034 = vmatpush1.msra.mxu0 %v1005
      %1035 = vmatprep.subr.mxu0 0.0
      %1036 = vmatpush1.msra.mxu0 %v1006
      %1037 = vmatprep.subr.mxu0 0.0
      %1038 = vmatpush1.msra.mxu0 %v1007
      %1039 = vmatprep.subr.mxu0 0.0
      %1040 = vmatpush1.msra.mxu0 %v1008
      %1041 = vmatprep.subr.mxu0 0.0
      %1042 = vmatpush1.msra.mxu0 0.0
      %1043 = vmatprep.subr.mxu0 0.0
      %1044 = vmatpush1.msra.mxu0 0.0
      %1045 = vmatprep.subr.mxu0 0.0
      %1046 = vmatpush1.msra.mxu0 0.0
      %1047 = vmatprep.subr.mxu0 0.0
      %1048 = vmatpush1.msra.mxu0 0.0
      %1049 = vmatprep.subr.mxu0 0.0
      %1050 = vmatpush1.msra.mxu0 0.0
      %1051 = vmatprep.subr.mxu0 0.0
      %1052 = vmatpush1.msra.mxu0 0.0
      %1053 = vmatprep.subr.mxu0 0.0
      %1054 = vmatpush1.msra.mxu0 0.0
      %1055 = vmatprep.subr.mxu0 0.0
      %1056 = vmatpush1.msra.mxu0 0.0
      %1057 = vmatprep.subr.mxu0 0.0
      %1058 = vmatpush1.msra.mxu0 0.0
      %1059 = vmatprep.subr.mxu0 0.0
      %1060 = vmatpush1.msra.mxu0 0.0
      %1061 = vmatprep.subr.mxu0 0.0
      %1062 = vmatpush1.msra.mxu0 0.0
      %1063 = vmatprep.subr.mxu0 0.0
      %1064 = vmatpush1.msra.mxu0 0.0
      %1065 = vmatprep.subr.mxu0 0.0
      %1066 = vmatpush1.msra.mxu0 0.0
      %1067 = vmatprep.subr.mxu0 0.0
      %1068 = vmatpush1.msra.mxu0 0.0
      %1069 = vmatprep.subr.mxu0 0.0
      %1070 = vmatpush1.msra.mxu0 0.0
      %1071 = vmatprep.subr.mxu0 0.0
      %1072 = vmatpush1.msra.mxu0 0.0
      %1073 = vmatprep.mubr.f32.mxu0 0.0
      %1074 = vmatmul.mubr.f32.gmra.mrb[0].mxu0 %v988
      %v1075 = vpop.f32.mrb[0].mxu0
      %v1076 = vadd.f32 0.0, %v1075
      %v1077 = vpop.f32.mrb[0].mxu0
      %1078 = vdwg.mxu0
      %v1079 = vadd.f32 %v992, %v1076
      %v1080 = vtanh.pop %v1079
      %s1081 = scalar_lea.vmem [#allocation4], 48
      %1082 = vst [vmem:[%s1081] sm:$0xff] %v1080
      %s1083 = scalar_lea.vmem [#allocation3], 56
      %v1084 = vld [vmem:[%s1083] sm:$0xff]
      %v1085 = vld [vmem:[%s2] sm:$0xff]
      %v1086 = vld [vmem:[%s2 + $0x8] sm:$0xff]
      %v1087 = vld [vmem:[%s2 + $0x10] sm:$0xff]
      %v1088 = vld [vmem:[%s2 + $0x18] sm:$0xff]
      %v1089 = vld [vmem:[%s2 + $0x20] sm:$0xff]
      %v1090 = vld [vmem:[%s2 + $0x28] sm:$0xff]
      %v1091 = vld [vmem:[%s2 + $0x30] sm:$0xff]
      %v1092 = vld [vmem:[%s2 + $0x38] sm:$0xff]
      %v1093 = vld [vmem:[%s2 + $0x40] sm:$0xff]
      %v1094 = vld [vmem:[%s2 + $0x48] sm:$0xff]
      %v1095 = vld [vmem:[%s2 + $0x50] sm:$0xff]
      %v1096 = vld [vmem:[%s2 + $0x58] sm:$0xff]
      %v1097 = vld [vmem:[%s2 + $0x60] sm:$0xff]
      %v1098 = vld [vmem:[%s2 + $0x68] sm:$0xff]
      %v1099 = vld [vmem:[%s2 + $0x70] sm:$0xff]
      %v1100 = vld [vmem:[%s2 + $0x78] sm:$0xff]
      %1101 = vmatprep.subr.mxu0 0.0
      %1102 = vmatpush1.msra.mxu0 %v1085
      %1103 = vmatprep.subr.mxu0 0.0
      %1104 = vmatpush1.msra.mxu0 %v1086
      %1105 = vmatprep.subr.mxu0 0.0
      %1106 = vmatpush1.msra.mxu0 %v1087
      %1107 = vmatprep.subr.mxu0 0.0
      %1108 = vmatpush1.msra.mxu0 %v1088
      %1109 = vmatprep.subr.mxu0 0.0
      %1110 = vmatpush1.msra.mxu0 %v1089
      %1111 = vmatprep.subr.mxu0 0.0
      %1112 = vmatpush1.msra.mxu0 %v1090
      %1113 = vmatprep.subr.mxu0 0.0
      %1114 = vmatpush1.msra.mxu0 %v1091
      %1115 = vmatprep.subr.mxu0 0.0
      %1116 = vmatpush1.msra.mxu0 %v1092
      %1117 = vmatprep.subr.mxu0 0.0
      %1118 = vmatpush1.msra.mxu0 %v1093
      %1119 = vmatprep.subr.mxu0 0.0
      %1120 = vmatpush1.msra.mxu0 %v1094
      %1121 = vmatprep.subr.mxu0 0.0
      %1122 = vmatpush1.msra.mxu0 %v1095
      %1123 = vmatprep.subr.mxu0 0.0
      %1124 = vmatpush1.msra.mxu0 %v1096
      %1125 = vmatprep.subr.mxu0 0.0
      %1126 = vmatpush1.msra.mxu0 %v1097
      %1127 = vmatprep.subr.mxu0 0.0
      %1128 = vmatpush1.msra.mxu0 %v1098
      %1129 = vmatprep.subr.mxu0 0.0
      %1130 = vmatpush1.msra.mxu0 %v1099
      %1131 = vmatprep.subr.mxu0 0.0
      %1132 = vmatpush1.msra.mxu0 %v1100
      %1133 = vmatprep.subr.mxu0 0.0
      %1134 = vmatpush1.msra.mxu0 0.0
      %1135 = vmatprep.subr.mxu0 0.0
      %1136 = vmatpush1.msra.mxu0 0.0
      %1137 = vmatprep.subr.mxu0 0.0
      %1138 = vmatpush1.msra.mxu0 0.0
      %1139 = vmatprep.subr.mxu0 0.0
      %1140 = vmatpush1.msra.mxu0 0.0
      %1141 = vmatprep.subr.mxu0 0.0
      %1142 = vmatpush1.msra.mxu0 0.0
      %1143 = vmatprep.subr.mxu0 0.0
      %1144 = vmatpush1.msra.mxu0 0.0
      %1145 = vmatprep.subr.mxu0 0.0
      %1146 = vmatpush1.msra.mxu0 0.0
      %1147 = vmatprep.subr.mxu0 0.0
      %1148 = vmatpush1.msra.mxu0 0.0
      %1149 = vmatprep.subr.mxu0 0.0
      %1150 = vmatpush1.msra.mxu0 0.0
      %1151 = vmatprep.subr.mxu0 0.0
      %1152 = vmatpush1.msra.mxu0 0.0
      %1153 = vmatprep.subr.mxu0 0.0
      %1154 = vmatpush1.msra.mxu0 0.0
      %1155 = vmatprep.subr.mxu0 0.0
      %1156 = vmatpush1.msra.mxu0 0.0
      %1157 = vmatprep.subr.mxu0 0.0
      %1158 = vmatpush1.msra.mxu0 0.0
      %1159 = vmatprep.subr.mxu0 0.0
      %1160 = vmatpush1.msra.mxu0 0.0
      %1161 = vmatprep.subr.mxu0 0.0
      %1162 = vmatpush1.msra.mxu0 0.0
      %1163 = vmatprep.subr.mxu0 0.0
      %1164 = vmatpush1.msra.mxu0 0.0
      %1165 = vmatprep.mubr.f32.mxu0 0.0
      %1166 = vmatmul.mubr.f32.gmra.mrb[0].mxu0 %v1080
      %v1167 = vpop.f32.mrb[0].mxu0
      %v1168 = vadd.f32 0.0, %v1167
      %v1169 = vpop.f32.mrb[0].mxu0
      %1170 = vdwg.mxu0
      %v1171 = vadd.f32 %v1084, %v1168
      %v1172 = vtanh.pop %v1171
      %s1173 = scalar_lea.vmem [#allocation4], 56
      %1174 = vst [vmem:[%s1173] sm:$0xff] %v1172
      %1175 = vst [vmem:[#allocation2] sm:$0xff] %v1172
      %v1176 = vld [vmem:[#allocation4] sm:$0xff]
      %v1177 = vld [vmem:[#allocation4 + $0x8] sm:$0xff]
      %v1178 = vld [vmem:[#allocation4 + $0x10] sm:$0xff]
      %v1179 = vld [vmem:[#allocation4 + $0x18] sm:$0xff]
      %v1180 = vld [vmem:[#allocation4 + $0x20] sm:$0xff]
      %v1181 = vld [vmem:[#allocation4 + $0x28] sm:$0xff]
      %v1182 = vld [vmem:[#allocation4 + $0x30] sm:$0xff]
      %v1183 = vld [vmem:[#allocation4 + $0x38] sm:$0xff]
      %v1184 = vld [vmem:[%s4] sm:$0xff]
      %v1185 = vld [vmem:[%s4 + $0x8] sm:$0xff]
      %v1186 = vld [vmem:[%s4 + $0x10] sm:$0xff]
      %v1187 = vld [vmem:[%s4 + $0x18] sm:$0xff]
      %v1188 = vld [vmem:[%s4 + $0x20] sm:$0xff]
      %v1189 = vld [vmem:[%s4 + $0x28] sm:$0xff]
      %v1190 = vld [vmem:[%s4 + $0x30] sm:$0xff]
      %v1191 = vld [vmem:[%s4 + $0x38] sm:$0xff]
      %v1192 = vld [vmem:[%s4 + $0x40] sm:$0xff]
      %v1193 = vld [vmem:[%s4 + $0x48] sm:$0xff]
      %v1194 = vld [vmem:[%s4 + $0x50] sm:$0xff]
      %v1195 = vld [vmem:[%s4 + $0x58] sm:$0xff]
      %v1196 = vld [vmem:[%s4 + $0x60] sm:$0xff]
      %v1197 = vld [vmem:[%s4 + $0x68] sm:$0xff]
      %v1198 = vld [vmem:[%s4 + $0x70] sm:$0xff]
      %v1199 = vld [vmem:[%s4 + $0x78] sm:$0xff]
      %v1200 = vld [vmem:[%s5] sm:$0x1]
      %v1202 = vlaneseq
      %v1203 = vshrl.u32 %v1202, 7
      %v1204 = vsub.s32 0, %v1203
      %v1205 = vrot.slane %v1200, %v1204
      %1207 = vmatprep.subr.mxu0 0.0
      %1208 = vmatpush1.msra.mxu0 %v1184
      %1209 = vmatprep.subr.mxu0 0.0
      %1210 = vmatpush1.msra.mxu0 %v1185
      %1211 = vmatprep.subr.mxu0 0.0
      %1212 = vmatpush1.msra.mxu0 %v1186
      %1213 = vmatprep.subr.mxu0 0.0
      %1214 = vmatpush1.msra.mxu0 %v1187
      %1215 = vmatprep.subr.mxu0 0.0
      %1216 = vmatpush1.msra.mxu0 %v1188
      %1217 = vmatprep.subr.mxu0 0.0
      %1218 = vmatpush1.msra.mxu0 %v1189
      %1219 = vmatprep.subr.mxu0 0.0
      %1220 = vmatpush1.msra.mxu0 %v1190
      %1221 = vmatprep.subr.mxu0 0.0
      %1222 = vmatpush1.msra.mxu0 %v1191
      %1223 = vmatprep.subr.mxu0 0.0
      %1224 = vmatpush1.msra.mxu0 %v1192
      %1225 = vmatprep.subr.mxu0 0.0
      %1226 = vmatpush1.msra.mxu0 %v1193
      %1227 = vmatprep.subr.mxu0 0.0
      %1228 = vmatpush1.msra.mxu0 %v1194
      %1229 = vmatprep.subr.mxu0 0.0
      %1230 = vmatpush1.msra.mxu0 %v1195
      %1231 = vmatprep.subr.mxu0 0.0
      %1232 = vmatpush1.msra.mxu0 %v1196
      %1233 = vmatprep.subr.mxu0 0.0
      %1234 = vmatpush1.msra.mxu0 %v1197
      %1235 = vmatprep.subr.mxu0 0.0
      %1236 = vmatpush1.msra.mxu0 %v1198
      %1237 = vmatprep.subr.mxu0 0.0
      %1238 = vmatpush1.msra.mxu0 %v1199
      %1239 = vmatprep.subr.mxu0 0.0
      %1240 = vmatpush1.msra.mxu0 0.0
      %1241 = vmatprep.subr.mxu0 0.0
      %1242 = vmatpush1.msra.mxu0 0.0
      %1243 = vmatprep.subr.mxu0 0.0
      %1244 = vmatpush1.msra.mxu0 0.0
      %1245 = vmatprep.subr.mxu0 0.0
      %1246 = vmatpush1.msra.mxu0 0.0
      %1247 = vmatprep.subr.mxu0 0.0
      %1248 = vmatpush1.msra.mxu0 0.0
      %1249 = vmatprep.subr.mxu0 0.0
      %1250 = vmatpush1.msra.mxu0 0.0
      %1251 = vmatprep.subr.mxu0 0.0
      %1252 = vmatpush1.msra.mxu0 0.0
      %1253 = vmatprep.subr.mxu0 0.0
      %1254 = vmatpush1.msra.mxu0 0.0
      %1255 = vmatprep.subr.mxu0 0.0
      %1256 = vmatpush1.msra.mxu0 0.0
      %1257 = vmatprep.subr.mxu0 0.0
      %1258 = vmatpush1.msra.mxu0 0.0
      %1259 = vmatprep.subr.mxu0 0.0
      %1260 = vmatpush1.msra.mxu0 0.0
      %1261 = vmatprep.subr.mxu0 0.0
      %1262 = vmatpush1.msra.mxu0 0.0
      %1263 = vmatprep.subr.mxu0 0.0
      %1264 = vmatpush1.msra.mxu0 0.0
      %1265 = vmatprep.subr.mxu0 0.0
      %1266 = vmatpush1.msra.mxu0 0.0
      %1267 = vmatprep.subr.mxu0 0.0
      %1268 = vmatpush1.msra.mxu0 0.0
      %1269 = vmatprep.subr.mxu0 0.0
      %1270 = vmatpush1.msra.mxu0 0.0
      %1271 = vmatprep.mubr.f32.mxu0 0.0
      %1272 = vmatmul.mubr.f32.gmra.mrb[0].mxu0 %v1176
      %v1273 = vpop.f32.mrb[0].mxu0
      %v1274 = vadd.f32 %v1205, %v1273
      %v1275 = vpop.f32.mrb[0].mxu0
      %1276 = vmatprep.mubr.f32.mxu0 0.0
      %1277 = vmatmul.mubr.f32.gmra.mrb[0].mxu0 %v1177
      %v1278 = vpop.f32.mrb[0].mxu0
      %v1279 = vadd.f32 %v1205, %v1278
      %v1280 = vpop.f32.mrb[0].mxu0
      %1281 = vmatprep.mubr.f32.mxu0 0.0
      %1282 = vmatmul.mubr.f32.gmra.mrb[0].mxu0 %v1178
      %v1283 = vpop.f32.mrb[0].mxu0
      %v1284 = vadd.f32 %v1205, %v1283
      %v1285 = vpop.f32.mrb[0].mxu0
      %1286 = vmatprep.mubr.f32.mxu0 0.0
      %1287 = vmatmul.mubr.f32.gmra.mrb[0].mxu0 %v1179
      %v1288 = vpop.f32.mrb[0].mxu0
      %v1289 = vadd.f32 %v1205, %v1288
      %v1290 = vpop.f32.mrb[0].mxu0
      %1291 = vmatprep.mubr.f32.mxu0 0.0
      %1292 = vmatmul.mubr.f32.gmra.mrb[0].mxu0 %v1180
      %v1293 = vpop.f32.mrb[0].mxu0
      %v1294 = vadd.f32 %v1205, %v1293
      %v1295 = vpop.f32.mrb[0].mxu0
      %1296 = vmatprep.mubr.f32.mxu0 0.0
      %1297 = vmatmul.mubr.f32.gmra.mrb[0].mxu0 %v1181
      %v1298 = vpop.f32.mrb[0].mxu0
      %v1299 = vadd.f32 %v1205, %v1298
      %v1300 = vpop.f32.mrb[0].mxu0
      %1301 = vmatprep.mubr.f32.mxu0 0.0
      %1302 = vmatmul.mubr.f32.gmra.mrb[0].mxu0 %v1182
      %v1303 = vpop.f32.mrb[0].mxu0
      %v1304 = vadd.f32 %v1205, %v1303
      %v1305 = vpop.f32.mrb[0].mxu0
      %1306 = vmatprep.mubr.f32.mxu0 0.0
      %1307 = vmatmul.mubr.f32.gmra.mrb[0].mxu0 %v1183
      %v1308 = vpop.f32.mrb[0].mxu0
      %v1309 = vadd.f32 %v1205, %v1308
      %v1310 = vpop.f32.mrb[0].mxu0
      %1311 = vdwg.mxu0
      %1312 = vst [vmem:[%s289] sm:$0xff] %v1274
      %1313 = vst [vmem:[%s289 + $0x8] sm:$0xff] %v1279
      %1314 = vst [vmem:[%s289 + $0x10] sm:$0xff] %v1284
      %1315 = vst [vmem:[%s289 + $0x18] sm:$0xff] %v1289
      %1316 = vst [vmem:[%s289 + $0x20] sm:$0xff] %v1294
      %1317 = vst [vmem:[%s289 + $0x28] sm:$0xff] %v1299
      %1318 = vst [vmem:[%s289 + $0x30] sm:$0xff] %v1304
      %1319 = vst [vmem:[%s289 + $0x38] sm:$0xff] %v1309
      %s1320 = smul.u32 8, %s22
      %p1321 = scmp.lt.s32.totalorder %s21, 0
      %s1322 = scalar_select %p1321, %s21, 0
      %p1323 = scmp.lt.s32.totalorder %s1320, 23
      %s1324 = scalar_select %p1323, %s1320, 23
      %s1325 = smul.addr %s1322, 24
      %s1326 = sadd.s32 %s1324, %s1325
      %s1327 = smul.addr %s1326, 8
      %s1328 = scalar_lea.vmem %s6, %s1327
      // Predicated region
      $region49: #{asr_forward.1} parent=43 // pred_check
        %p1329 = pneg %p182
      $region50: #{asr_forward.1} parent=43 // pred_check_branch
        %1331 = sbr.rel (%p1329) target = $region52
      $region51: #{asr_forward.1} parent=43 // pred_region
        %s1332 = smul.u32 8, %s22
      $region52: #{asr_forward.1} parent=43 // pred_fallthru
        _
    $region44: #{asr_forward.1} parent=5 // pred_fallthru
      _
    %p1333 = scmp.le.s32.totalorder 2, %s12
    // Predicated region
    $region53: #{asr_forward.1} parent=5 // pred_check
      %p1334 = pneg %p1333
    $region54: #{asr_forward.1} parent=5 // pred_check_branch
      %1336 = sbr.rel (%p1334) target = $region56
    $region55: #{asr_forward.1} parent=5 // pred_region
      %s1337 = ssub.s32 %s12, 2
      // Predicated region
      $region57: #{asr_forward.1} parent=55 // pred_check
        %p1338 = pneg %p188
      $region58: #{asr_forward.1} parent=55 // pred_check_branch
        %1340 = sbr.rel (%p1338) target = $region60
      $region59: #{asr_forward.1} parent=55 // pred_region
        %s1341 = smul.u32 8, %s24
        %p1342 = scmp.lt.s32.totalorder %s23, 0
        %s1343 = scalar_select %p1342, %s23, 0
        %p1344 = scmp.lt.s32.totalorder %s1341, 23
        %s1345 = scalar_select %p1344, %s1341, 23
        %s1346 = smul.addr %s1343, 24
        %s1347 = sadd.s32 %s1345, %s1346
        %s1348 = smul.addr %s1347, 8
        %s1349 = scalar_lea.vmem %s6, %s1348
      $region60: #{asr_forward.1} parent=55 // pred_fallthru
        _
    $region56: #{asr_forward.1} parent=5 // pred_fallthru
      _
  $region6: #{asr_forward.1} parent=0 // loop_footer
    %s16 = sadd.s32 1, %s12
  $region7: #{asr_forward.1} parent=0 // loop_footer_branch
    %11 = sbr.rel target = $region3
  $region8: #{asr_forward.1} parent=0 // loop_exit
    _

</llo_original>
